<compile_context>
chip_gen: v5e
topology: v5e:2x2
jax: 0.10.0
libtpu: 0.0.40
codegen_flags: <defaults>
</compile_context>

<pallas_src>
import functools

import jax
import jax.numpy as jnp
from jax.experimental import pallas as pl
from jax.experimental.pallas import tpu as pltpu

# ----------------------------- static model config -----------------------------
F_FEATS = 4                        # feats
N_WINDOW = 5                       # n_window
N_HIDDEN = 16                      # n_hidden
N_IN = N_WINDOW * F_FEATS          # 20
N_OUT = F_FEATS * N_WINDOW         # 20
FH = F_FEATS * F_FEATS             # 16 (node, head) pairs
EDGE = F_FEATS * FH                # 64 complete-graph edges per head-slab
GAT_ROWS = FH + 3 * EDGE           # 208: z, el(src), er(dst), z(src)
ATT_ROWS = 24                      # N_IN padded to a sublane multiple
WBIG_ROWS = ATT_ROWS + GAT_ROWS    # 232
VEC_ROWS = 24
B_TILE = 512                       # batch lanes per grid step (multiple of 128)


# ------------------------------- Pallas kernel ---------------------------------
def _gdn_kernel(x_ref, wbig_ref, vecs_ref, bd_ref, out_ref):
    f32 = jnp.float32
    x = x_ref[...]                                        # (20, Bt) flat window, batch on lanes

    w_att = wbig_ref[0:N_IN, :]                           # (20,20) = expand(w) @ (aw3 aw2 aw1)
    m_gat = wbig_ref[ATT_ROWS:ATT_ROWS + GAT_ROWS, :]     # (208,20) folded GAT expansions
    b_att = vecs_ref[0:N_IN, 0:1]                         # (20,1) expanded attention bias
    alr = vecs_ref[0:FH, 1:2]                             # (16,1) attn_l + attn_r per (node,head)
    gbias = vecs_ref[0:FH, 2:3]                           # (16,1) GATConv bias per (node,head)
    bcol = vecs_ref[0:N_OUT, 3:4]                         # (20,1) folded fcn bias

    # ---- attention MLP (identity LeakyReLUs removed, layers folded) + Softmax(dim=0) ----
    # Logits are pre-expanded to the flat (w, f) row order, so att multiplies x directly.
    logits = jnp.dot(w_att, x, preferred_element_type=f32) + b_att        # (20, Bt)
    logits = logits - jnp.max(logits, axis=0, keepdims=True)
    p = jnp.exp(logits)
    # each window logit appears F_FEATS times -> true softmax denominator = sum / F_FEATS
    att = p * (float(F_FEATS) / jnp.sum(p, axis=0, keepdims=True))        # (20, Bt)

    # ---- GAT input expansion: one MXU push gives all edge-softmax operands ----
    # m_gat already folds (per-head GAT weights) @ (sum over windows), so it acts on x*att.
    g = jnp.dot(m_gat, x * att, preferred_element_type=f32)               # (208, Bt)
    z = g[0:FH]                       # (16,B) z[node*4+h] = fc[h] * data_r[node]
    el_e = g[FH:FH + EDGE]            # (64,B) rows src*16 + dst*4 + h : el[src, h]
    er_e = g[FH + EDGE:FH + 2 * EDGE]                      #            : er[dst, h]
    z_src = g[FH + 2 * EDGE:FH + 3 * EDGE]                 #            : z[src, h]

    lrelu = lambda v: jnp.where(v >= 0, v, 0.2 * v)        # DGL GAT default slope

    e = lrelu(el_e + er_e)                                 # (64, Bt) complete-graph edges
    e_self = lrelu(z * alr)                                # (16, Bt) duplicated self edge

    # edge softmax over incoming edges of each (dst, head): 4 source slabs + extra self edge
    s0, s1, s2, s3 = e[0:16], e[16:32], e[32:48], e[48:64]
    m = jnp.maximum(jnp.maximum(s0, s1), jnp.maximum(s2, s3))             # (16, Bt)
    p0, p1 = jnp.exp(s0 - m), jnp.exp(s1 - m)
    p2, p3 = jnp.exp(s2 - m), jnp.exp(s3 - m)
    ps = jnp.exp(e_self - m)
    den = p0 + p1 + p2 + p3 + ps
    num = (p0 * z_src[0:16] + p1 * z_src[16:32] +
           p2 * z_src[32:48] + p3 * z_src[48:64] + ps * z)
    feat = num / den + gbias                               # (16, Bt) (node, head) flattened

    # ---- fcn (identity LeakyReLU removed, both Linears folded, block-diagonal over nodes) ----
    o = jnp.dot(bd_ref[...], feat, preferred_element_type=f32) + bcol     # (20, Bt)
    out_ref[...] = 1.0 / (1.0 + jnp.exp(-o))               # exact sigmoid


# ------------------------------ host-side folding -------------------------------
def init_params(key):
    ks = jax.random.split(key, 13)

    def normal(k, shape, scale=0.3):
        return (scale * jax.random.normal(k, shape)).astype(jnp.float32)

    return dict(
        # self.attention: Linear(20,16), Linear(16,16), Linear(16,5) -- torch (out,in) layout
        aw1=normal(ks[0], (N_HIDDEN, N_IN)), ab1=normal(ks[1], (N_HIDDEN, 1)),
        aw2=normal(ks[2], (N_HIDDEN, N_HIDDEN)), ab2=normal(ks[3], (N_HIDDEN, 1)),
        aw3=normal(ks[4], (N_WINDOW, N_HIDDEN)), ab3=normal(ks[5], (N_WINDOW, 1)),
        # GATConv(1, 1, num_heads=4): fc weight, attn_l, attn_r, optional bias
        gat_fc=normal(ks[6], (F_FEATS, 1)),
        gat_al=normal(ks[7], (F_FEATS, 1)),
        gat_ar=normal(ks[8], (F_FEATS, 1)),
        gat_b=jnp.zeros((F_FEATS, 1), jnp.float32),
        # self.fcn: Linear(4,16), Linear(16,5)
        fw1=normal(ks[9], (N_HIDDEN, F_FEATS)), fb1=normal(ks[10], (N_HIDDEN, 1)),
        fw2=normal(ks[11], (N_WINDOW, N_HIDDEN)), fb2=normal(ks[12], (N_WINDOW, 1)),
    )


def prepare_params(params):
    """Fold / pack all weights once on the host (hoisted out of the per-call path)."""
    f32 = jnp.float32
    eye_f = jnp.eye(F_FEATS, dtype=f32)

    # attention MLP fold (LeakyReLU(True) == identity)
    w_att = params["aw3"] @ params["aw2"] @ params["aw1"]                                  # (5,20)
    b_att = params["aw3"] @ (params["aw2"] @ params["ab1"] + params["ab2"]) + params["ab3"]  # (5,1)
    # expand window index w to the flat (w, f) row ordering of the input
    expand_w = jnp.repeat(jnp.eye(N_WINDOW, dtype=f32), F_FEATS, axis=0)                   # (20,5)
    w_att_e = expand_w @ w_att                                                             # (20,20)
    b_att_e = expand_w @ b_att                                                             # (20,1)

    # data_r = sum_w data[w, f] * att[w]  ==  S @ (x * att_expanded)
    sum_w = jnp.tile(eye_f, (1, N_WINDOW))                                                 # (4,20)

    # GAT per-head expansion matrices; edge-slab rows are ordered src*16 + dst*4 + head
    fc = params["gat_fc"][:, 0]
    al = params["gat_al"][:, 0]
    ar = params["gat_ar"][:, 0]
    gb = params["gat_b"][:, 0]
    col = lambda v: v.reshape(F_FEATS, 1)
    z_mat = jnp.kron(eye_f, col(fc))                                                       # (16,4)
    el_mat = jnp.kron(eye_f, jnp.tile(col(fc * al), (F_FEATS, 1)))                         # (64,4)
    er_mat = jnp.tile(jnp.kron(eye_f, col(fc * ar)), (F_FEATS, 1))                         # (64,4)
    zr_mat = jnp.kron(eye_f, jnp.tile(col(fc), (F_FEATS, 1)))                              # (64,4)
    m_gat = jnp.concatenate(
        [z_mat @ sum_w, el_mat @ sum_w, er_mat @ sum_w, zr_mat @ sum_w], axis=0)           # (208,20)

    w_big = jnp.zeros((WBIG_ROWS, N_IN), f32)
    w_big = w_big.at[0:N_IN].set(w_att_e)
    w_big = w_big.at[ATT_ROWS:ATT_ROWS + GAT_ROWS].set(m_gat)

    # fcn fold: Linear(4,16) -> identity -> Linear(16,5) == one (5,4) linear per graph node
    cw = params["fw2"] @ params["fw1"]                                                     # (5,4)
    cb = params["fw2"] @ params["fb1"] + params["fb2"]                                     # (5,1)
    bd = jnp.kron(eye_f, cw)                                                               # (20,16)
    bcol = jnp.tile(cb, (F_FEATS, 1))                                                      # (20,1)

    vecs = jnp.zeros((VEC_ROWS, 4), f32)
    vecs = vecs.at[0:N_IN, 0].set(b_att_e[:, 0])
    vecs = vecs.at[0:FH, 1].set(jnp.tile(al + ar, F_FEATS))
    vecs = vecs.at[0:FH, 2].set(jnp.tile(gb, F_FEATS))
    vecs = vecs.at[0:N_OUT, 3].set(bcol[:, 0])

    return dict(w_big=w_big, vecs=vecs, bd=bd)


# --------------------------------- forward wrapper -------------------------------
def _round_up(x, m):
    return (x + m - 1) // m * m


def gdn_forward(data, packed):
    """data: (B, n_window, n_feats) float32 -> (B, n_feats*n_window); row b == GDN(data[b])."""
    B = data.shape[0]
    flat = data.astype(jnp.float32).reshape(B, N_IN)
    Bp = _round_up(max(B, 1), 128)
    tile = min(B_TILE, Bp)                     # multiple of 128 by construction
    Bp = _round_up(Bp, tile)
    if Bp != B:
        flat = jnp.pad(flat, ((0, Bp - B), (0, 0)))
    x_nb = flat.T                              # (20, Bp): batch on the 128-lane axis

    out = pl.pallas_call(
        _gdn_kernel,
        out_shape=jax.ShapeDtypeStruct((N_OUT, Bp), jnp.float32),
        grid_spec=pltpu.PrefetchScalarGridSpec(
            num_scalar_prefetch=0,
            grid=(Bp // tile,),
            in_specs=[
                pl.BlockSpec((N_IN, tile), lambda g: (0, g)),
                pl.BlockSpec((WBIG_ROWS, N_IN), lambda g: (0, 0)),
                pl.BlockSpec((VEC_ROWS, 4), lambda g: (0, 0)),
                pl.BlockSpec((N_OUT, FH), lambda g: (0, 0)),
            ],
            out_specs=pl.BlockSpec((N_OUT, tile), lambda g: (0, g)),
        ),
        compiler_params=pltpu.CompilerParams(
            dimension_semantics=("parallel",)),            # batch tiles shard across v7x TCs
    )(x_nb, packed["w_big"], packed["vecs"], packed["bd"])

    return out.T[:B]                                       # per-sample x.view(-1), shape (B, 20)


# ---------------------------- pure-JAX reference (check) -------------------------
def gdn_reference(data, params):
    B = data.shape[0]
    flat = data.reshape(B, N_IN)
    lrelu = lambda v: jnp.where(v >= 0, v, 0.2 * v)
    with jax.default_matmul_precision("float32"):
        h = flat @ params["aw1"].T + params["ab1"][:, 0]          # LeakyReLU(True) == identity
        h = h @ params["aw2"].T + params["ab2"][:, 0]
        att = jax.nn.softmax(h @ params["aw3"].T + params["ab3"][:, 0], axis=-1)      # (B,5)
        data_r = jnp.einsum("bwf,bw->bf", data.reshape(B, N_WINDOW, F_FEATS), att)    # (B,4)
        fc, al, ar, gb = (params[k][:, 0] for k in ("gat_fc", "gat_al", "gat_ar", "gat_b"))
        z = data_r[:, :, None] * fc                               # (B, node, head)
        el, er = z * al, z * ar
        e = lrelu(er[:, :, None, :] + el[:, None, :, :])          # (B, dst, src, head)
        e_self = lrelu(er + el)                                   # duplicated self edge
        m = jnp.maximum(e.max(axis=2), e_self)
        pe, ps = jnp.exp(e - m[:, :, None, :]), jnp.exp(e_self - m)
        den = pe.sum(axis=2) + ps
        feat = (jnp.einsum("bdsh,bsh->bdh", pe, z) + ps * z) / den + gb
        x1 = feat @ params["fw1"].T + params["fb1"][:, 0]
        x2 = x1 @ params["fw2"].T + params["fb2"][:, 0]
    return jax.nn.sigmoid(x2).reshape(B, -1)


if __name__ == "__main__":
    key = jax.random.PRNGKey(0)
    k_data, k_par = jax.random.split(key)
    B = 2048                                           # -> 4 grid steps of 512 batch lanes
    data = jax.random.normal(k_data, (B, N_WINDOW, F_FEATS), dtype=jnp.float32)
    params = init_params(k_par)
    packed = prepare_params(params)                    # host-side fold, done once

    fwd = jax.jit(gdn_forward)
    x = jax.block_until_ready(fwd(data, packed))

    assert x.shape == (B, F_FEATS * N_WINDOW)
    assert bool(jnp.all(jnp.isfinite(x)))
    assert bool(jnp.all((x >= 0.0) & (x <= 1.0)))

    ref = gdn_reference(data, params)
    err = float(jnp.max(jnp.abs(x - ref)))
    assert err < 5e-3, f"mismatch vs pure-JAX reference: {err}"

    print("KERNEL_OK")
</pallas_src>

<mosaic_0001>
module attributes {stable_mosaic.version = 11 : i64} {
  func.func @_gdn_kernel(%arg0: i32, %arg1: memref<20x512xf32, #tpu.memory_space<vmem>>, %arg2: memref<232x20xf32, #tpu.memory_space<vmem>>, %arg3: memref<24x4xf32, #tpu.memory_space<vmem>>, %arg4: memref<20x16xf32, #tpu.memory_space<vmem>>, %arg5: memref<20x512xf32, #tpu.memory_space<vmem>>) attributes {dimension_semantics = [#tpu.dimension_semantics<parallel>], iteration_bounds = array<i64: 4>, scalar_prefetch = 0 : i64, scratch_operands = 0 : i64, tpu.core_type = #tpu.core_type<tc>, window_params = [{transform_indices = @transform_0, window_bounds = array<i64: 20, 512>}, {pipeline_mode = #tpu.pipeline_mode<synchronous>, transform_indices = @transform_1, window_bounds = array<i64: 232, 20>}, {pipeline_mode = #tpu.pipeline_mode<synchronous>, transform_indices = @transform_2, window_bounds = array<i64: 24, 4>}, {pipeline_mode = #tpu.pipeline_mode<synchronous>, transform_indices = @transform_3, window_bounds = array<i64: 20, 16>}, {transform_indices = @transform_4, window_bounds = array<i64: 20, 512>}]} {
    %c0 = arith.constant 0 : index
    %c0_0 = arith.constant 0 : index
    %0 = vector.load %arg1[%c0, %c0_0] : memref<20x512xf32, #tpu.memory_space<vmem>>, vector<20x512xf32>
    %c0_1 = arith.constant 0 : index
    %c0_2 = arith.constant 0 : index
    %1 = vector.load %arg2[%c0_1, %c0_2] : memref<232x20xf32, #tpu.memory_space<vmem>>, vector<20x20xf32>
    %c24 = arith.constant 24 : index
    %c0_3 = arith.constant 0 : index
    %2 = vector.load %arg2[%c24, %c0_3] : memref<232x20xf32, #tpu.memory_space<vmem>>, vector<208x20xf32>
    %c0_4 = arith.constant 0 : index
    %c0_5 = arith.constant 0 : index
    %3 = vector.load %arg3[%c0_4, %c0_5] : memref<24x4xf32, #tpu.memory_space<vmem>>, vector<20x1xf32>
    %c0_6 = arith.constant 0 : index
    %c1 = arith.constant 1 : index
    %4 = vector.load %arg3[%c0_6, %c1] : memref<24x4xf32, #tpu.memory_space<vmem>>, vector<16x1xf32>
    %c0_7 = arith.constant 0 : index
    %c2 = arith.constant 2 : index
    %5 = vector.load %arg3[%c0_7, %c2] : memref<24x4xf32, #tpu.memory_space<vmem>>, vector<16x1xf32>
    %c0_8 = arith.constant 0 : index
    %c3 = arith.constant 3 : index
    %6 = vector.load %arg3[%c0_8, %c3] : memref<24x4xf32, #tpu.memory_space<vmem>>, vector<20x1xf32>
    %cst = arith.constant dense<0.000000e+00> : vector<20x512xf32>
    %7 = tpu.matmul %1, %0, %cst {dimension_numbers = #tpu.dot_dimension_numbers<[1], [0], [0], [1], [0, 0, 1, 1], [], []>} : vector<20x20xf32>, vector<20x512xf32>, vector<20x512xf32> -> vector<20x512xf32>
    %8 = vector.broadcast %3 : vector<20x1xf32> to vector<20x512xf32>
    %9 = arith.addf %7, %8 : vector<20x512xf32>
    %cst_9 = arith.constant dense<0xFF800000> : vector<512xf32>
    %10 = vector.multi_reduction <maximumf>, %9, %cst_9 [0] : vector<20x512xf32> to vector<512xf32>
    %11 = vector.shape_cast %10 : vector<512xf32> to vector<1x512xf32>
    %12 = vector.broadcast %11 : vector<1x512xf32> to vector<20x512xf32>
    %13 = arith.subf %9, %12 : vector<20x512xf32>
    %14 = math.exp %13 : vector<20x512xf32>
    %cst_10 = arith.constant dense<0.000000e+00> : vector<512xf32>
    %15 = vector.multi_reduction <add>, %14, %cst_10 [0] : vector<20x512xf32> to vector<512xf32>
    %16 = vector.shape_cast %15 : vector<512xf32> to vector<1x512xf32>
    %cst_11 = arith.constant 4.000000e+00 : f32
    %17 = vector.broadcast %cst_11 : f32 to vector<1x512xf32>
    %18 = arith.divf %17, %16 : vector<1x512xf32>
    %19 = vector.broadcast %18 : vector<1x512xf32> to vector<20x512xf32>
    %20 = arith.mulf %14, %19 : vector<20x512xf32>
    %21 = arith.mulf %0, %20 : vector<20x512xf32>
    %cst_12 = arith.constant dense<0.000000e+00> : vector<208x512xf32>
    %22 = tpu.matmul %2, %21, %cst_12 {dimension_numbers = #tpu.dot_dimension_numbers<[1], [0], [0], [1], [0, 0, 1, 1], [], []>} : vector<208x20xf32>, vector<20x512xf32>, vector<208x512xf32> -> vector<208x512xf32>
    %23 = vector.extract_strided_slice %22 {offsets = [0, 0], sizes = [16, 512], strides = [1, 1]} : vector<208x512xf32> to vector<16x512xf32>
    %24 = vector.extract_strided_slice %22 {offsets = [16, 0], sizes = [64, 512], strides = [1, 1]} : vector<208x512xf32> to vector<64x512xf32>
    %25 = vector.extract_strided_slice %22 {offsets = [80, 0], sizes = [64, 512], strides = [1, 1]} : vector<208x512xf32> to vector<64x512xf32>
    %26 = vector.extract_strided_slice %22 {offsets = [144, 0], sizes = [64, 512], strides = [1, 1]} : vector<208x512xf32> to vector<64x512xf32>
    %27 = arith.addf %24, %25 : vector<64x512xf32>
    %cst_13 = arith.constant 0.000000e+00 : f32
    %28 = vector.broadcast %cst_13 : f32 to vector<64x512xf32>
    %29 = arith.cmpf oge, %27, %28 : vector<64x512xf32>
    %cst_14 = arith.constant 2.000000e-01 : f32
    %30 = vector.broadcast %cst_14 : f32 to vector<64x512xf32>
    %31 = arith.mulf %30, %27 : vector<64x512xf32>
    %32 = arith.select %29, %27, %31 : vector<64x512xi1>, vector<64x512xf32>
    %33 = vector.broadcast %4 : vector<16x1xf32> to vector<16x512xf32>
    %34 = arith.mulf %23, %33 : vector<16x512xf32>
    %cst_15 = arith.constant 0.000000e+00 : f32
    %35 = vector.broadcast %cst_15 : f32 to vector<16x512xf32>
    %36 = arith.cmpf oge, %34, %35 : vector<16x512xf32>
    %cst_16 = arith.constant 2.000000e-01 : f32
    %37 = vector.broadcast %cst_16 : f32 to vector<16x512xf32>
    %38 = arith.mulf %37, %34 : vector<16x512xf32>
    %39 = arith.select %36, %34, %38 : vector<16x512xi1>, vector<16x512xf32>
    %40 = vector.extract_strided_slice %32 {offsets = [0, 0], sizes = [16, 512], strides = [1, 1]} : vector<64x512xf32> to vector<16x512xf32>
    %41 = vector.extract_strided_slice %32 {offsets = [16, 0], sizes = [16, 512], strides = [1, 1]} : vector<64x512xf32> to vector<16x512xf32>
    %42 = vector.extract_strided_slice %32 {offsets = [32, 0], sizes = [16, 512], strides = [1, 1]} : vector<64x512xf32> to vector<16x512xf32>
    %43 = vector.extract_strided_slice %32 {offsets = [48, 0], sizes = [16, 512], strides = [1, 1]} : vector<64x512xf32> to vector<16x512xf32>
    %44 = arith.maximumf %40, %41 : vector<16x512xf32>
    %45 = arith.maximumf %42, %43 : vector<16x512xf32>
    %46 = arith.maximumf %44, %45 : vector<16x512xf32>
    %47 = arith.subf %40, %46 : vector<16x512xf32>
    %48 = math.exp %47 : vector<16x512xf32>
    %49 = arith.subf %41, %46 : vector<16x512xf32>
    %50 = math.exp %49 : vector<16x512xf32>
    %51 = arith.subf %42, %46 : vector<16x512xf32>
    %52 = math.exp %51 : vector<16x512xf32>
    %53 = arith.subf %43, %46 : vector<16x512xf32>
    %54 = math.exp %53 : vector<16x512xf32>
    %55 = arith.subf %39, %46 : vector<16x512xf32>
    %56 = math.exp %55 : vector<16x512xf32>
    %57 = arith.addf %48, %50 : vector<16x512xf32>
    %58 = arith.addf %57, %52 : vector<16x512xf32>
    %59 = arith.addf %58, %54 : vector<16x512xf32>
    %60 = arith.addf %59, %56 : vector<16x512xf32>
    %61 = vector.extract_strided_slice %26 {offsets = [0, 0], sizes = [16, 512], strides = [1, 1]} : vector<64x512xf32> to vector<16x512xf32>
    %62 = arith.mulf %48, %61 : vector<16x512xf32>
    %63 = vector.extract_strided_slice %26 {offsets = [16, 0], sizes = [16, 512], strides = [1, 1]} : vector<64x512xf32> to vector<16x512xf32>
    %64 = arith.mulf %50, %63 : vector<16x512xf32>
    %65 = arith.addf %62, %64 : vector<16x512xf32>
    %66 = vector.extract_strided_slice %26 {offsets = [32, 0], sizes = [16, 512], strides = [1, 1]} : vector<64x512xf32> to vector<16x512xf32>
    %67 = arith.mulf %52, %66 : vector<16x512xf32>
    %68 = arith.addf %65, %67 : vector<16x512xf32>
    %69 = vector.extract_strided_slice %26 {offsets = [48, 0], sizes = [16, 512], strides = [1, 1]} : vector<64x512xf32> to vector<16x512xf32>
    %70 = arith.mulf %54, %69 : vector<16x512xf32>
    %71 = arith.addf %68, %70 : vector<16x512xf32>
    %72 = arith.mulf %56, %23 : vector<16x512xf32>
    %73 = arith.addf %71, %72 : vector<16x512xf32>
    %74 = arith.divf %73, %60 : vector<16x512xf32>
    %75 = vector.broadcast %5 : vector<16x1xf32> to vector<16x512xf32>
    %76 = arith.addf %74, %75 : vector<16x512xf32>
    %c0_17 = arith.constant 0 : index
    %c0_18 = arith.constant 0 : index
    %77 = vector.load %arg4[%c0_17, %c0_18] : memref<20x16xf32, #tpu.memory_space<vmem>>, vector<20x16xf32>
    %cst_19 = arith.constant dense<0.000000e+00> : vector<20x512xf32>
    %78 = tpu.matmul %77, %76, %cst_19 {dimension_numbers = #tpu.dot_dimension_numbers<[1], [0], [0], [1], [0, 0, 1, 1], [], []>} : vector<20x16xf32>, vector<16x512xf32>, vector<20x512xf32> -> vector<20x512xf32>
    %79 = vector.broadcast %6 : vector<20x1xf32> to vector<20x512xf32>
    %80 = arith.addf %78, %79 : vector<20x512xf32>
    %cst_20 = arith.constant 0.000000e+00 : f32
    %81 = vector.broadcast %cst_20 : f32 to vector<20x512xf32>
    %82 = arith.subf %81, %80 : vector<20x512xf32>
    %83 = math.exp %82 : vector<20x512xf32>
    %cst_21 = arith.constant 1.000000e+00 : f32
    %84 = vector.broadcast %cst_21 : f32 to vector<20x512xf32>
    %85 = arith.addf %84, %83 : vector<20x512xf32>
    %cst_22 = arith.constant 1.000000e+00 : f32
    %86 = vector.broadcast %cst_22 : f32 to vector<20x512xf32>
    %87 = arith.divf %86, %85 : vector<20x512xf32>
    %c0_23 = arith.constant 0 : index
    %c0_24 = arith.constant 0 : index
    %88 = vector.load %arg5[%c0_23, %c0_24] : memref<20x512xf32, #tpu.memory_space<vmem>>, vector<20x512xf32>
    tpu.vector_store %arg5[%c0_23, %c0_24], %87 {strides = array<i32>} : memref<20x512xf32, #tpu.memory_space<vmem>>, vector<20x512xf32>,
    return
  }
  func.func @transform_0(%arg0: i32) -> (i32, i32) {
    %c0_i32 = arith.constant 0 : i32
    %c0_i32_0 = arith.constant 0 : i32
    return %c0_i32, %arg0 : i32, i32
  }
  func.func @transform_1(%arg0: i32) -> (i32, i32) {
    %c0_i32 = arith.constant 0 : i32
    %c0_i32_0 = arith.constant 0 : i32
    %c0_i32_1 = arith.constant 0 : i32
    return %c0_i32, %c0_i32_0 : i32, i32
  }
  func.func @transform_2(%arg0: i32) -> (i32, i32) {
    %c0_i32 = arith.constant 0 : i32
    %c0_i32_0 = arith.constant 0 : i32
    %c0_i32_1 = arith.constant 0 : i32
    return %c0_i32, %c0_i32_0 : i32, i32
  }
  func.func @transform_3(%arg0: i32) -> (i32, i32) {
    %c0_i32 = arith.constant 0 : i32
    %c0_i32_0 = arith.constant 0 : i32
    %c0_i32_1 = arith.constant 0 : i32
    return %c0_i32, %c0_i32_0 : i32, i32
  }
  func.func @transform_4(%arg0: i32) -> (i32, i32) {
    %c0_i32 = arith.constant 0 : i32
    %c0_i32_0 = arith.constant 0 : i32
    return %c0_i32, %arg0 : i32, i32
  }
}

</mosaic_0001>

<llo_original>
// kernel: gdn_forward.1
$region0: #{gdn_forward.1}
  #allocation0 [shape = 'u32[]', space=smem, size = 0x4, offset = 0x4, fixed_abs, tag = 'smem constant byte address 0x4 - core index']
  #allocation1 [shape = 'u32[72,128]{1,0:T(1,128)}', space=vmem, size = 0x9000, scoped, tag = 'internal scratch']
  %s0 = inlined_call_operand.vmem [shape: f32[20,2048], index: 0, kind: input, shape index: {}]
  %s1 = inlined_call_operand.vmem [shape: f32[232,20], index: 1, kind: input, shape index: {}]
  %s2 = inlined_call_operand.vmem [shape: f32[24,4], index: 2, kind: input, shape index: {}]
  %s3 = inlined_call_operand.vmem [shape: f32[20,16], index: 3, kind: input, shape index: {}]
  %s4 = inlined_call_operand.hbm [shape: f32[20,2048], index: 4, kind: output, shape index: {}]
  %s5 = sld [smem:[#allocation0]]
  $region72: #{gdn_forward.1} parent=0
    _
  %s7 = ssub.s32 1, %s5
  %s8 = scalar_select 0, %s7, %s5
  $region1: #{gdn_forward.1} parent=0
    #allocation2 [shape = 'u8[98304]{0}', space=vmem, size = 0x18000, scoped, tag = 'input window, operand 0']
    #allocation3 [shape = 'u8[98304]{0}', space=vmem, size = 0x18000, scoped, tag = 'output window, operand 0']
    #allocation4 [shape = 's32[2]{0}', space=sflag, size = 0x8, scoped, tag = 'scoped memory for gdn_forward.1']
    %9 = vsyncpa [#allocation4], 0
    %s10 = scalar_lea.sflag [#allocation4], 1
    %11 = vsyncpa %s10, 0
    loop: start=0, step=1, limit=6
    $region2: #{gdn_forward.1} parent=1 // loop_pre_header
      _
    $region3: #{gdn_forward.1} parent=1 // loop_header
      %s13 = sphi 0, %s17
      %p14 = scmp.ge.s32.totalorder %s13, 6
      %s23 = sphi 0, %s25
      %s26 = sphi 0, %s23
      %s27 = sphi 0, %s26
      %s43 = sphi 0, %s27
      %s47 = sphi 0, %s47
      %s49 = sphi 0, %s47
      %s50 = sphi 0, %s49
      %s64 = sphi 0, %s50
      %s68 = sphi 0, %s68
      %s70 = sphi 0, %s68
      %s71 = sphi 0, %s70
      %s85 = sphi 0, %s71
      %s89 = sphi 0, %s89
      %s91 = sphi 0, %s89
      %s92 = sphi 0, %s91
      %s106 = sphi 0, %s92
      %s112 = sphi 0, %s114
      %s115 = sphi 0, %s112
      %s116 = sphi 0, %s115
      %s132 = sphi 0, %s116
    $region4: #{gdn_forward.1} parent=1 // loop_header_branch
      %16 = sbr.rel (%p14) target = $region8
    $region5: #{gdn_forward.1} parent=1 // loop_body
      %s18 = ssub.s32 %s13, 1
      %s19 = ssub.s32 %s13, 2
      %s20 = sadd.s32 %s13, 1
      %s21 = ssub.s32 %s13, %s20
      %p22 = scmp.eq.s32.totalorder %s21, 0
      %s24 = sadd.s32 %s23, 1
      %s25 = scalar_select %p22, %s23, %s24
      %p28 = pneg %p22
      %p29 = scmp.eq.s32.totalorder %s13, 3
      %p30 = por %p28, %p29
      %p31 = scmp.ne.s32.totalorder %s23, %s26
      %p32 = scmp.eq.s32.totalorder %s13, 0
      %p33 = por %p31, %p32
      %p34 = scmp.ne.s32.totalorder %s23, %s26
      %p35 = scmp.eq.s32.totalorder %s18, 3
      %p36 = por %p34, %p35
      %p37 = scmp.ne.s32.totalorder %s26, %s27
      %p38 = scmp.eq.s32.totalorder %s18, 0
      %p39 = por %p37, %p38
      %p40 = scmp.ne.s32.totalorder %s26, %s27
      %p41 = scmp.eq.s32.totalorder %s19, 3
      %p42 = por %p40, %p41
      %p44 = scmp.ne.s32.totalorder %s27, %s43
      %p45 = scmp.eq.s32.totalorder %s19, 0
      %p46 = por %p44, %p45
      %s48 = sadd.s32 %s47, 1
      %p51 = scmp.eq.s32.totalorder %s13, 3
      %p52 = scmp.ne.s32.totalorder %s47, %s49
      %p53 = scmp.eq.s32.totalorder %s13, 0
      %p54 = por %p52, %p53
      %p55 = scmp.ne.s32.totalorder %s47, %s49
      %p56 = scmp.eq.s32.totalorder %s18, 3
      %p57 = por %p55, %p56
      %p58 = scmp.ne.s32.totalorder %s49, %s50
      %p59 = scmp.eq.s32.totalorder %s18, 0
      %p60 = por %p58, %p59
      %p61 = scmp.ne.s32.totalorder %s49, %s50
      %p62 = scmp.eq.s32.totalorder %s19, 3
      %p63 = por %p61, %p62
      %p65 = scmp.ne.s32.totalorder %s50, %s64
      %p66 = scmp.eq.s32.totalorder %s19, 0
      %p67 = por %p65, %p66
      %s69 = sadd.s32 %s68, 1
      %p72 = scmp.eq.s32.totalorder %s13, 3
      %p73 = scmp.ne.s32.totalorder %s68, %s70
      %p74 = scmp.eq.s32.totalorder %s13, 0
      %p75 = por %p73, %p74
      %p76 = scmp.ne.s32.totalorder %s68, %s70
      %p77 = scmp.eq.s32.totalorder %s18, 3
      %p78 = por %p76, %p77
      %p79 = scmp.ne.s32.totalorder %s70, %s71
      %p80 = scmp.eq.s32.totalorder %s18, 0
      %p81 = por %p79, %p80
      %p82 = scmp.ne.s32.totalorder %s70, %s71
      %p83 = scmp.eq.s32.totalorder %s19, 3
      %p84 = por %p82, %p83
      %p86 = scmp.ne.s32.totalorder %s71, %s85
      %p87 = scmp.eq.s32.totalorder %s19, 0
      %p88 = por %p86, %p87
      %s90 = sadd.s32 %s89, 1
      %p93 = scmp.eq.s32.totalorder %s13, 3
      %p94 = scmp.ne.s32.totalorder %s89, %s91
      %p95 = scmp.eq.s32.totalorder %s13, 0
      %p96 = por %p94, %p95
      %p97 = scmp.ne.s32.totalorder %s89, %s91
      %p98 = scmp.eq.s32.totalorder %s18, 3
      %p99 = por %p97, %p98
      %p100 = scmp.ne.s32.totalorder %s91, %s92
      %p101 = scmp.eq.s32.totalorder %s18, 0
      %p102 = por %p100, %p101
      %p103 = scmp.ne.s32.totalorder %s91, %s92
      %p104 = scmp.eq.s32.totalorder %s19, 3
      %p105 = por %p103, %p104
      %p107 = scmp.ne.s32.totalorder %s92, %s106
      %p108 = scmp.eq.s32.totalorder %s19, 0
      %p109 = por %p107, %p108
      %s110 = ssub.s32 %s13, %s20
      %p111 = scmp.eq.s32.totalorder %s110, 0
      %s113 = sadd.s32 %s112, 1
      %s114 = scalar_select %p111, %s112, %s113
      %p117 = pneg %p111
      %p118 = scmp.eq.s32.totalorder %s13, 3
      %p119 = por %p117, %p118
      %p120 = scmp.ne.s32.totalorder %s112, %s115
      %p121 = scmp.eq.s32.totalorder %s13, 0
      %p122 = por %p120, %p121
      %p123 = scmp.ne.s32.totalorder %s112, %s115
      %p124 = scmp.eq.s32.totalorder %s18, 3
      %p125 = por %p123, %p124
      %p126 = scmp.ne.s32.totalorder %s115, %s116
      %p127 = scmp.eq.s32.totalorder %s18, 0
      %p128 = por %p126, %p127
      %p129 = scmp.ne.s32.totalorder %s115, %s116
      %p130 = scmp.eq.s32.totalorder %s19, 3
      %p131 = por %p129, %p130
      %p133 = scmp.ne.s32.totalorder %s116, %s132
      %p134 = scmp.eq.s32.totalorder %s19, 0
      %p135 = por %p133, %p134
      %p136 = scmp.le.s32.totalorder 1, %s13
      %p137 = scmp.lt.s32.totalorder %s13, 5
      %p138 = pnand %p136, %p137
      %p139 = pneg %p138
      // Predicated region
      $region9: #{gdn_forward.1} parent=5 // pred_check
        _
      $region10: #{gdn_forward.1} parent=5 // pred_check_branch
        %141 = sbr.rel (%p138) target = $region12
      $region11: #{gdn_forward.1} parent=5 // pred_region
        %s142 = ssub.s32 %s13, 1
        // Predicated region
        $region13: #{gdn_forward.1} parent=11 // pred_check
          %p143 = pneg %p60
        $region14: #{gdn_forward.1} parent=11 // pred_check_branch
          %145 = sbr.rel (%p143) target = $region16
        $region15: #{gdn_forward.1} parent=11 // pred_region
          _
        $region16: #{gdn_forward.1} parent=11 // pred_fallthru
          _
        // Predicated region
        $region17: #{gdn_forward.1} parent=11 // pred_check
          %p146 = pneg %p81
        $region18: #{gdn_forward.1} parent=11 // pred_check_branch
          %148 = sbr.rel (%p146) target = $region20
        $region19: #{gdn_forward.1} parent=11 // pred_region
          _
        $region20: #{gdn_forward.1} parent=11 // pred_fallthru
          _
        // Predicated region
        $region21: #{gdn_forward.1} parent=11 // pred_check
          %p149 = pneg %p102
        $region22: #{gdn_forward.1} parent=11 // pred_check_branch
          %151 = sbr.rel (%p149) target = $region24
        $region23: #{gdn_forward.1} parent=11 // pred_region
          _
        $region24: #{gdn_forward.1} parent=11 // pred_fallthru
          _
      $region12: #{gdn_forward.1} parent=5 // pred_fallthru
        _
      %p152 = scmp.lt.s32.totalorder %s13, 4
      // Predicated region
      $region25: #{gdn_forward.1} parent=5 // pred_check
        %p153 = pneg %p152
      $region26: #{gdn_forward.1} parent=5 // pred_check_branch
        %155 = sbr.rel (%p153) target = $region28
      $region27: #{gdn_forward.1} parent=5 // pred_region
        // Predicated region
        $region29: #{gdn_forward.1} parent=27 // pred_check
          %p156 = pneg %p33
        $region30: #{gdn_forward.1} parent=27 // pred_check_branch
          %158 = sbr.rel (%p156) target = $region32
        $region31: #{gdn_forward.1} parent=27 // pred_region
          %s159 = sand.u32 %s23, 1
          %s160 = sand.u32 %s23, 1
          %s161 = smul.addr %s160, 96
          %s162 = scalar_lea.vmem [#allocation2], %s161
          %s163 = smul.u32 4, %s13
          %s164 = smul.addr %s163, 8
          %s165 = scalar_lea.vmem %s0, %s164
          // Predicated region
          $region33: #{gdn_forward.1} parent=31 // pred_check
            _
          $region34: #{gdn_forward.1} parent=31 // pred_check_branch
            %167 = sbr.rel (0) target = $region36
          $region35: #{gdn_forward.1} parent=31 // pred_region
            // Predicated region
            $region37: #{gdn_forward.1} parent=35 // pred_check
              _
            $region38: #{gdn_forward.1} parent=35 // pred_check_branch
              %169 = sbr.rel (0) target = $region40
            $region39: #{gdn_forward.1} parent=35 // pred_region
              loop: start=0, step=1, limit=1
              $region41: #{gdn_forward.1} parent=39 // loop_pre_header
                _
              $region42: #{gdn_forward.1} parent=39 // loop_header
                %s171 = sphi 0, %s175
                %p172 = scmp.ge.s32.totalorder %s171, 1
                %s176 = sphi %s165, %s165
                %s177 = sphi %s162, %s162
              $region43: #{gdn_forward.1} parent=39 // loop_header_branch
                %174 = sbr.rel (%p172) target = $region47
              $region44: #{gdn_forward.1} parent=39 // loop_body
                %v178 = vld [vmem:[%s176] sm:$0xff]
                %179 = vst [vmem:[%s177] sm:$0xff] %v178
                %v180 = vld [vmem:[%s176 + $0x8] sm:$0xff]
                %181 = vst [vmem:[%s177 + $0x8] sm:$0xff] %v180
                %v182 = vld [vmem:[%s176 + $0x10] sm:$0xff]
                %183 = vst [vmem:[%s177 + $0x10] sm:$0xff] %v182
                %v184 = vld [vmem:[%s176 + $0x18] sm:$0xff]
                %185 = vst [vmem:[%s177 + $0x18] sm:$0xff] %v184
                %v186 = vld [vmem:[%s176 + $0x80] sm:$0xff]
                %187 = vst [vmem:[%s177 + $0x20] sm:$0xff] %v186
                %v188 = vld [vmem:[%s176 + $0x88] sm:$0xff]
                %189 = vst [vmem:[%s177 + $0x28] sm:$0xff] %v188
                %v190 = vld [vmem:[%s176 + $0x90] sm:$0xff]
                %191 = vst [vmem:[%s177 + $0x30] sm:$0xff] %v190
                %v192 = vld [vmem:[%s176 + $0x98] sm:$0xff]
                %193 = vst [vmem:[%s177 + $0x38] sm:$0xff] %v192
                %v194 = vld [vmem:[%s176 + $0x100] sm:$0xff]
                %195 = vst [vmem:[%s177 + $0x40] sm:$0xff] %v194
                %v196 = vld [vmem:[%s176 + $0x108] sm:$0xff]
                %197 = vst [vmem:[%s177 + $0x48] sm:$0xff] %v196
                %v198 = vld [vmem:[%s176 + $0x110] sm:$0xff]
                %199 = vst [vmem:[%s177 + $0x50] sm:$0xff] %v198
                %v200 = vld [vmem:[%s176 + $0x118] sm:$0xff]
                %201 = vst [vmem:[%s177 + $0x58] sm:$0xff] %v200
              $region45: #{gdn_forward.1} parent=39 // loop_footer
                %s175 = sadd.s32 1, %s171
              $region46: #{gdn_forward.1} parent=39 // loop_footer_branch
                %170 = sbr.rel target = $region42
              $region47: #{gdn_forward.1} parent=39 // loop_exit
                _
            $region40: #{gdn_forward.1} parent=35 // pred_fallthru
              _
            // Predicated region
            $region48: #{gdn_forward.1} parent=35 // pred_check
              _
            $region49: #{gdn_forward.1} parent=35 // pred_check_branch
              %203 = sbr.rel target = $region51
            $region50: #{gdn_forward.1} parent=35 // pred_region
              _
            $region51: #{gdn_forward.1} parent=35 // pred_fallthru
              _
          $region36: #{gdn_forward.1} parent=31 // pred_fallthru
            _
          %204 = vnop
        $region32: #{gdn_forward.1} parent=27 // pred_fallthru
          _
      $region28: #{gdn_forward.1} parent=5 // pred_fallthru
        _
      %p205 = scmp.le.s32.totalorder 1, %s13
      %p206 = scmp.lt.s32.totalorder %s13, 5
      %p207 = pnand %p205, %p206
      %p208 = pneg %p207
      // Predicated region
      $region52: #{gdn_forward.1} parent=5 // pred_check
        _
      $region53: #{gdn_forward.1} parent=5 // pred_check_branch
        %210 = sbr.rel (%p207) target = $region55
      $region54: #{gdn_forward.1} parent=5 // pred_region
        %s211 = ssub.s32 %s13, 1
        %s212 = sand.u32 %s26, 1
        %s213 = sand.u32 %s26, 1
        %s214 = smul.addr %s213, 96
        %s215 = scalar_lea.vmem [#allocation2], %s214
        // Predicated region
        $region56: #{gdn_forward.1} parent=54 // pred_check
          %p216 = pneg %p39
        $region57: #{gdn_forward.1} parent=54 // pred_check_branch
          %218 = sbr.rel (%p216) target = $region59
        $region58: #{gdn_forward.1} parent=54 // pred_region
          _
        $region59: #{gdn_forward.1} parent=54 // pred_fallthru
          _
        %s219 = sand.u32 %s26, 1
        %s220 = sand.u32 %s26, 1
        %s221 = smul.addr %s220, 96
        %s222 = scalar_lea.vmem [#allocation2], %s221
        %p223 = pneg %p39
        %p224 = pneg %p36
        %p225 = pneg %p60
        %p226 = pneg %p57
        %p227 = pneg %p81
        %p228 = pneg %p78
        %p229 = pneg %p102
        %p230 = pneg %p99
        %p231 = pneg %p128
        %p232 = pneg %p125
        %s233 = sand.u32 %s115, 1
        %s234 = scalar_lea.sflag [#allocation4], %s233
        %s235 = sand.u32 %s115, 1
        %s236 = smul.addr %s235, 96
        %s237 = scalar_lea.vmem [#allocation3], %s236
        %s238 = smul.u32 4, %s18
        %s239 = smul.u32 4, %s18
        %v240 = vld [vmem:[%s215] sm:$0xff]
        %v241 = vld [vmem:[%s215 + $0x8] sm:$0xff]
        %v242 = vld [vmem:[%s215 + $0x10] sm:$0xff]
        %v243 = vld [vmem:[%s215 + $0x18] sm:$0xff]
        %v244 = vld [vmem:[%s215 + $0x20] sm:$0xff]
        %v245 = vld [vmem:[%s215 + $0x28] sm:$0xff]
        %v246 = vld [vmem:[%s215 + $0x30] sm:$0xff]
        %v247 = vld [vmem:[%s215 + $0x38] sm:$0xff]
        %v248 = vld [vmem:[%s215 + $0x40] sm:$0xf]
        %v249 = vld [vmem:[%s215 + $0x48] sm:$0xf]
        %v250 = vld [vmem:[%s215 + $0x50] sm:$0xf]
        %v251 = vld [vmem:[%s215 + $0x58] sm:$0xf]
        %v252 = vld [vmem:[%s1] sm:$0xff]
        %v253 = vld [vmem:[%s1 + $0x8] sm:$0xff]
        %v254 = vld [vmem:[%s1 + $0x10] sm:$0xf]
        %v255 = vld [vmem:[%s1 + $0x18] sm:$0xff]
        %v256 = vld [vmem:[%s1 + $0x20] sm:$0xff]
        %v257 = vld [vmem:[%s1 + $0x28] sm:$0xff]
        %v258 = vld [vmem:[%s1 + $0x30] sm:$0xff]
        %v259 = vld [vmem:[%s1 + $0x38] sm:$0xff]
        %v260 = vld [vmem:[%s1 + $0x40] sm:$0xff]
        %v261 = vld [vmem:[%s1 + $0x48] sm:$0xff]
        %v262 = vld [vmem:[%s1 + $0x50] sm:$0xff]
        %v263 = vld [vmem:[%s1 + $0x58] sm:$0xff]
        %v264 = vld [vmem:[%s1 + $0x60] sm:$0xff]
        %v265 = vld [vmem:[%s1 + $0x68] sm:$0xff]
        %v266 = vld [vmem:[%s1 + $0x70] sm:$0xff]
        %v267 = vld [vmem:[%s1 + $0x78] sm:$0xff]
        %v268 = vld [vmem:[%s1 + $0x80] sm:$0xff]
        %v269 = vld [vmem:[%s1 + $0x88] sm:$0xff]
        %v270 = vld [vmem:[%s1 + $0x90] sm:$0xff]
        %v271 = vld [vmem:[%s1 + $0x98] sm:$0xff]
        %v272 = vld [vmem:[%s1 + $0xa0] sm:$0xff]
        %v273 = vld [vmem:[%s1 + $0xa8] sm:$0xff]
        %v274 = vld [vmem:[%s1 + $0xb0] sm:$0xff]
        %v275 = vld [vmem:[%s1 + $0xb8] sm:$0xff]
        %v276 = vld [vmem:[%s1 + $0xc0] sm:$0xff]
        %v277 = vld [vmem:[%s1 + $0xc8] sm:$0xff]
        %v278 = vld [vmem:[%s1 + $0xd0] sm:$0xff]
        %v279 = vld [vmem:[%s1 + $0xd8] sm:$0xff]
        %v280 = vld [vmem:[%s1 + $0xe0] sm:$0xff]
        %v281 = vld [vmem:[%s2] sm:$0xff]
        %v282 = vld [vmem:[%s2 + $0x8] sm:$0xff]
        %v283 = vld [vmem:[%s2 + $0x10] sm:$0xf]
        %285 = vset.pattern.permute.xlu0 0
        %286 = vperm.xlu0 %285, %v281
        %v287 = vpop.permute.xlu0 %286
        %290 = vset.pattern.permute.xlu0 0
        %291 = vperm.xlu0 %290, %v282
        %v292 = vpop.permute.xlu0 %291
        %295 = vset.pattern.permute.xlu0 0
        %296 = vperm.xlu0 %295, %v283
        %v297 = vpop.permute.xlu0 %296
        %vm299 = vcmask 162816
        %v301 = vsel %vm299, %v252, 0
        %v304 = vsel %vm299, %v253, 0
        %v307 = vsel %vm299, %v254, 0
        %vm309 = vcmask 1043456
        %v311 = vsel %vm309, %v248, 0
        %v314 = vsel %vm309, %v249, 0
        %v317 = vsel %vm309, %v250, 0
        %v320 = vsel %vm309, %v251, 0
        %322 = vmatpush.msra.mxu0 0.0
        %323 = vmatpush.msra.mxu0 0.0
        %324 = vmatpush.msra.mxu0 0.0
        %325 = vmatpush.msra.mxu0 0.0
        %326 = vmatpush.msra.mxu0 0.0
        %327 = vmatpush.msra.mxu0 0.0
        %328 = vmatpush.msra.mxu0 0.0
        %329 = vmatpush.msra.mxu0 0.0
        %330 = vmatpush.msra.mxu0 0.0
        %331 = vmatpush.msra.mxu0 0.0
        %332 = vmatpush.msra.mxu0 0.0
        %333 = vmatpush.msra.mxu0 0.0
        %334 = vmatpush.msra.mxu0 0.0
        %335 = vmatpush.msra.mxu0 %v311
        %336 = vmatpush.msra.mxu0 %v244
        %337 = vmatpush.msra.mxu0 %v240
        %338 = vmatmul.f32.gmra.mxu0 %v301
        %v339 = vpop.f32.mrf.mxu0
        %v340 = vadd.f32 %v287, %v339
        %341 = vmatmul.f32.gmra.mxu0 %v304
        %v342 = vpop.f32.mrf.mxu0
        %v343 = vadd.f32 %v292, %v342
        %344 = vmatmul.f32.gmra.mxu0 %v307
        %v345 = vpop.f32.mrf.mxu0
        %v346 = vadd.f32 %v297, %v345
        %347 = vdwg.mxu0
        %348 = vmatpush.msra.mxu0 0.0
        %349 = vmatpush.msra.mxu0 0.0
        %350 = vmatpush.msra.mxu0 0.0
        %351 = vmatpush.msra.mxu0 0.0
        %352 = vmatpush.msra.mxu0 0.0
        %353 = vmatpush.msra.mxu0 0.0
        %354 = vmatpush.msra.mxu0 0.0
        %355 = vmatpush.msra.mxu0 0.0
        %356 = vmatpush.msra.mxu0 0.0
        %357 = vmatpush.msra.mxu0 0.0
        %358 = vmatpush.msra.mxu0 0.0
        %359 = vmatpush.msra.mxu0 0.0
        %360 = vmatpush.msra.mxu0 0.0
        %361 = vmatpush.msra.mxu0 %v314
        %362 = vmatpush.msra.mxu0 %v245
        %363 = vmatpush.msra.mxu0 %v241
        %364 = vmatmul.f32.gmra.mxu0 %v301
        %v365 = vpop.f32.mrf.mxu0
        %v366 = vadd.f32 %v287, %v365
        %367 = vmatmul.f32.gmra.mxu0 %v304
        %v368 = vpop.f32.mrf.mxu0
        %v369 = vadd.f32 %v292, %v368
        %370 = vmatmul.f32.gmra.mxu0 %v307
        %v371 = vpop.f32.mrf.mxu0
        %v372 = vadd.f32 %v297, %v371
        %373 = vdwg.mxu0
        %374 = vmatpush.msra.mxu0 0.0
        %375 = vmatpush.msra.mxu0 0.0
        %376 = vmatpush.msra.mxu0 0.0
        %377 = vmatpush.msra.mxu0 0.0
        %378 = vmatpush.msra.mxu0 0.0
        %379 = vmatpush.msra.mxu0 0.0
        %380 = vmatpush.msra.mxu0 0.0
        %381 = vmatpush.msra.mxu0 0.0
        %382 = vmatpush.msra.mxu0 0.0
        %383 = vmatpush.msra.mxu0 0.0
        %384 = vmatpush.msra.mxu0 0.0
        %385 = vmatpush.msra.mxu0 0.0
        %386 = vmatpush.msra.mxu0 0.0
        %387 = vmatpush.msra.mxu0 %v317
        %388 = vmatpush.msra.mxu0 %v246
        %389 = vmatpush.msra.mxu0 %v242
        %390 = vmatmul.f32.gmra.mxu0 %v301
        %v391 = vpop.f32.mrf.mxu0
        %v392 = vadd.f32 %v287, %v391
        %393 = vmatmul.f32.gmra.mxu0 %v304
        %v394 = vpop.f32.mrf.mxu0
        %v395 = vadd.f32 %v292, %v394
        %396 = vmatmul.f32.gmra.mxu0 %v307
        %v397 = vpop.f32.mrf.mxu0
        %v398 = vadd.f32 %v297, %v397
        %399 = vdwg.mxu0
        %400 = vmatpush.msra.mxu0 0.0
        %401 = vmatpush.msra.mxu0 0.0
        %402 = vmatpush.msra.mxu0 0.0
        %403 = vmatpush.msra.mxu0 0.0
        %404 = vmatpush.msra.mxu0 0.0
        %405 = vmatpush.msra.mxu0 0.0
        %406 = vmatpush.msra.mxu0 0.0
        %407 = vmatpush.msra.mxu0 0.0
        %408 = vmatpush.msra.mxu0 0.0
        %409 = vmatpush.msra.mxu0 0.0
        %410 = vmatpush.msra.mxu0 0.0
        %411 = vmatpush.msra.mxu0 0.0
        %412 = vmatpush.msra.mxu0 0.0
        %413 = vmatpush.msra.mxu0 %v320
        %414 = vmatpush.msra.mxu0 %v247
        %415 = vmatpush.msra.mxu0 %v243
        %416 = vmatmul.f32.gmra.mxu0 %v301
        %v417 = vpop.f32.mrf.mxu0
        %v418 = vadd.f32 %v287, %v417
        %419 = vmatmul.f32.gmra.mxu0 %v304
        %v420 = vpop.f32.mrf.mxu0
        %v421 = vadd.f32 %v292, %v420
        %422 = vmatmul.f32.gmra.mxu0 %v307
        %v423 = vpop.f32.mrf.mxu0
        %v424 = vadd.f32 %v297, %v423
        %425 = vdwg.mxu0
        %v426 = vmax.f32 %v340, %v343
        %v427 = vsel %vm309, %v346, -inf
        %v428 = vmax.f32 %v426, %v427
        %v429 = vrot.slane %v428, 4
        %v430 = vmax.f32 %v428, %v429
        %v431 = vrot.slane %v430, 2
        %v432 = vmax.f32 %v430, %v431
        %v433 = vrot.slane %v432, 1
        %v434 = vmax.f32 %v432, %v433
        %v435 = vmax.f32 %v366, %v369
        %v436 = vsel %vm309, %v372, -inf
        %v437 = vmax.f32 %v435, %v436
        %v438 = vrot.slane %v437, 4
        %v439 = vmax.f32 %v437, %v438
        %v440 = vrot.slane %v439, 2
        %v441 = vmax.f32 %v439, %v440
        %v442 = vrot.slane %v441, 1
        %v443 = vmax.f32 %v441, %v442
        %v444 = vmax.f32 %v392, %v395
        %v445 = vsel %vm309, %v398, -inf
        %v446 = vmax.f32 %v444, %v445
        %v447 = vrot.slane %v446, 4
        %v448 = vmax.f32 %v446, %v447
        %v449 = vrot.slane %v448, 2
        %v450 = vmax.f32 %v448, %v449
        %v451 = vrot.slane %v450, 1
        %v452 = vmax.f32 %v450, %v451
        %v453 = vmax.f32 %v418, %v421
        %v454 = vsel %vm309, %v424, -inf
        %v455 = vmax.f32 %v453, %v454
        %v456 = vrot.slane %v455, 4
        %v457 = vmax.f32 %v455, %v456
        %v458 = vrot.slane %v457, 2
        %v459 = vmax.f32 %v457, %v458
        %v460 = vrot.slane %v459, 1
        %v461 = vmax.f32 %v459, %v460
        %v462 = vsub.f32 %v340, %v434
        %v463 = vsub.f32 %v366, %v443
        %v464 = vsub.f32 %v392, %v452
        %v465 = vsub.f32 %v418, %v461
        %v466 = vsub.f32 %v343, %v434
        %v467 = vsub.f32 %v369, %v443
        %v468 = vsub.f32 %v395, %v452
        %v469 = vsub.f32 %v421, %v461
        %v470 = vsub.f32 %v346, %v434
        %v471 = vsub.f32 %v372, %v443
        %v472 = vsub.f32 %v398, %v452
        %v473 = vsub.f32 %v424, %v461
        %v474 = vmul.f32 %v462, 1.442695
        %v475 = vpow.pop %v474
        %v476 = vmul.f32 %v463, 1.442695
        %v477 = vpow.pop %v476
        %v478 = vmul.f32 %v464, 1.442695
        %v479 = vpow.pop %v478
        %v480 = vmul.f32 %v465, 1.442695
        %v481 = vpow.pop %v480
        %v482 = vmul.f32 %v466, 1.442695
        %v483 = vpow.pop %v482
        %v484 = vmul.f32 %v467, 1.442695
        %v485 = vpow.pop %v484
        %v486 = vmul.f32 %v468, 1.442695
        %v487 = vpow.pop %v486
        %v488 = vmul.f32 %v469, 1.442695
        %v489 = vpow.pop %v488
        %v490 = vmul.f32 %v470, 1.442695
        %v491 = vpow.pop %v490
        %v492 = vmul.f32 %v471, 1.442695
        %v493 = vpow.pop %v492
        %v494 = vmul.f32 %v472, 1.442695
        %v495 = vpow.pop %v494
        %v496 = vmul.f32 %v473, 1.442695
        %v497 = vpow.pop %v496
        %v498 = vadd.f32 %v475, %v483
        %v499 = vsel %vm309, %v491, 0.0
        %v500 = vadd.f32 %v498, %v499
        %v501 = vrot.slane %v500, 4
        %v502 = vadd.f32 %v500, %v501
        %v503 = vrot.slane %v502, 2
        %v504 = vadd.f32 %v502, %v503
        %v505 = vrot.slane %v504, 1
        %v506 = vadd.f32 %v504, %v505
        %v507 = vadd.f32 %v477, %v485
        %v508 = vsel %vm309, %v493, 0.0
        %v509 = vadd.f32 %v507, %v508
        %v510 = vrot.slane %v509, 4
        %v511 = vadd.f32 %v509, %v510
        %v512 = vrot.slane %v511, 2
        %v513 = vadd.f32 %v511, %v512
        %v514 = vrot.slane %v513, 1
        %v515 = vadd.f32 %v513, %v514
        %v516 = vadd.f32 %v479, %v487
        %v517 = vsel %vm309, %v495, 0.0
        %v518 = vadd.f32 %v516, %v517
        %v519 = vrot.slane %v518, 4
        %v520 = vadd.f32 %v518, %v519
        %v521 = vrot.slane %v520, 2
        %v522 = vadd.f32 %v520, %v521
        %v523 = vrot.slane %v522, 1
        %v524 = vadd.f32 %v522, %v523
        %v525 = vadd.f32 %v481, %v489
        %v526 = vsel %vm309, %v497, 0.0
        %v527 = vadd.f32 %v525, %v526
        %v528 = vrot.slane %v527, 4
        %v529 = vadd.f32 %v527, %v528
        %v530 = vrot.slane %v529, 2
        %v531 = vadd.f32 %v529, %v530
        %v532 = vrot.slane %v531, 1
        %v533 = vadd.f32 %v531, %v532
        %v534 = vrcp.pop %v506
        %v535 = vmul.f32 %v506, %v534
        %v536 = vsub.f32 1.0, %v535
        %v537 = vmul.f32 %v534, %v536
        %v538 = vadd.f32 %v534, %v537
        %vm539 = vweird.f32 %v506
        %vm540 = vweird.f32 %v534
        %vm541 = vmor %vm539, %vm540
        %v542 = vsel %vm541, %v534, %v538
        %v543 = vand.u32 2147483647, %v506
        %vm544 = vcmp.eq.f32.partialorder %v543, 8.507059e+37
        %v545 = vand.u32 %v506, 2147483648
        %v546 = vor.u32 1.1754944e-38, %v545
        %v547 = vsel %vm544, %v546, %v542
        %v548 = vmul.f32 4.0, %v547
        %v549 = vrcp.pop %v515
        %v550 = vmul.f32 %v515, %v549
        %v551 = vsub.f32 1.0, %v550
        %v552 = vmul.f32 %v549, %v551
        %v553 = vadd.f32 %v549, %v552
        %vm554 = vweird.f32 %v515
        %vm555 = vweird.f32 %v549
        %vm556 = vmor %vm554, %vm555
        %v557 = vsel %vm556, %v549, %v553
        %v558 = vand.u32 2147483647, %v515
        %vm559 = vcmp.eq.f32.partialorder %v558, 8.507059e+37
        %v560 = vand.u32 %v515, 2147483648
        %v561 = vor.u32 1.1754944e-38, %v560
        %v562 = vsel %vm559, %v561, %v557
        %v563 = vmul.f32 4.0, %v562
        %v564 = vrcp.pop %v524
        %v565 = vmul.f32 %v524, %v564
        %v566 = vsub.f32 1.0, %v565
        %v567 = vmul.f32 %v564, %v566
        %v568 = vadd.f32 %v564, %v567
        %vm569 = vweird.f32 %v524
        %vm570 = vweird.f32 %v564
        %vm571 = vmor %vm569, %vm570
        %v572 = vsel %vm571, %v564, %v568
        %v573 = vand.u32 2147483647, %v524
        %vm574 = vcmp.eq.f32.partialorder %v573, 8.507059e+37
        %v575 = vand.u32 %v524, 2147483648
        %v576 = vor.u32 1.1754944e-38, %v575
        %v577 = vsel %vm574, %v576, %v572
        %v578 = vmul.f32 4.0, %v577
        %v579 = vrcp.pop %v533
        %v580 = vmul.f32 %v533, %v579
        %v581 = vsub.f32 1.0, %v580
        %v582 = vmul.f32 %v579, %v581
        %v583 = vadd.f32 %v579, %v582
        %vm584 = vweird.f32 %v533
        %vm585 = vweird.f32 %v579
        %vm586 = vmor %vm584, %vm585
        %v587 = vsel %vm586, %v579, %v583
        %v588 = vand.u32 2147483647, %v533
        %vm589 = vcmp.eq.f32.partialorder %v588, 8.507059e+37
        %v590 = vand.u32 %v533, 2147483648
        %v591 = vor.u32 1.1754944e-38, %v590
        %v592 = vsel %vm589, %v591, %v587
        %v593 = vmul.f32 4.0, %v592
        %v594 = vmul.f32 %v475, %v548
        %v595 = vmul.f32 %v477, %v563
        %v596 = vmul.f32 %v479, %v578
        %v597 = vmul.f32 %v481, %v593
        %v598 = vmul.f32 %v483, %v548
        %v599 = vmul.f32 %v485, %v563
        %v600 = vmul.f32 %v487, %v578
        %v601 = vmul.f32 %v489, %v593
        %v602 = vmul.f32 %v491, %v548
        %v603 = vmul.f32 %v493, %v563
        %v604 = vmul.f32 %v495, %v578
        %v605 = vmul.f32 %v497, %v593
        %v606 = vmul.f32 %v240, %v594
        %v607 = vmul.f32 %v241, %v595
        %v608 = vmul.f32 %v242, %v596
        %v609 = vmul.f32 %v243, %v597
        %v610 = vmul.f32 %v244, %v598
        %v611 = vmul.f32 %v245, %v599
        %v612 = vmul.f32 %v246, %v600
        %v613 = vmul.f32 %v247, %v601
        %v614 = vmul.f32 %v248, %v602
        %v615 = vmul.f32 %v249, %v603
        %v616 = vmul.f32 %v250, %v604
        %v617 = vmul.f32 %v251, %v605
        %v619 = vsel %vm299, %v255, 0
        %v622 = vsel %vm299, %v256, 0
        %v625 = vsel %vm299, %v257, 0
        %v628 = vsel %vm299, %v258, 0
        %v631 = vsel %vm299, %v259, 0
        %v634 = vsel %vm299, %v260, 0
        %v637 = vsel %vm299, %v261, 0
        %v640 = vsel %vm299, %v262, 0
        %v643 = vsel %vm299, %v263, 0
        %v646 = vsel %vm299, %v264, 0
        %v649 = vsel %vm299, %v265, 0
        %v652 = vsel %vm299, %v266, 0
        %v655 = vsel %vm299, %v267, 0
        %v658 = vsel %vm299, %v268, 0
        %v661 = vsel %vm299, %v269, 0
        %v664 = vsel %vm299, %v270, 0
        %v667 = vsel %vm299, %v271, 0
        %v670 = vsel %vm299, %v272, 0
        %v673 = vsel %vm299, %v273, 0
        %v676 = vsel %vm299, %v274, 0
        %v679 = vsel %vm299, %v275, 0
        %v682 = vsel %vm299, %v276, 0
        %v685 = vsel %vm299, %v277, 0
        %v688 = vsel %vm299, %v278, 0
        %v691 = vsel %vm299, %v279, 0
        %v694 = vsel %vm299, %v280, 0
        %v697 = vsel %vm309, %v614, 0
        %v700 = vsel %vm309, %v615, 0
        %v703 = vsel %vm309, %v616, 0
        %v706 = vsel %vm309, %v617, 0
        %708 = vmatpush.msra.mxu0 0.0
        %709 = vmatpush.msra.mxu0 0.0
        %710 = vmatpush.msra.mxu0 0.0
        %711 = vmatpush.msra.mxu0 0.0
        %712 = vmatpush.msra.mxu0 0.0
        %713 = vmatpush.msra.mxu0 0.0
        %714 = vmatpush.msra.mxu0 0.0
        %715 = vmatpush.msra.mxu0 0.0
        %716 = vmatpush.msra.mxu0 0.0
        %717 = vmatpush.msra.mxu0 0.0
        %718 = vmatpush.msra.mxu0 0.0
        %719 = vmatpush.msra.mxu0 0.0
        %720 = vmatpush.msra.mxu0 0.0
        %721 = vmatpush.msra.mxu0 %v697
        %722 = vmatpush.msra.mxu0 %v610
        %723 = vmatpush.msra.mxu0 %v606
        %724 = vmatmul.f32.gmra.mxu0 %v619
        %v725 = vpop.f32.mrf.mxu0
        %v726 = vadd.f32 0.0, %v725
        %727 = vmatmul.f32.gmra.mxu0 %v622
        %v728 = vpop.f32.mrf.mxu0
        %v729 = vadd.f32 0.0, %v728
        %730 = vmatmul.f32.gmra.mxu0 %v625
        %v731 = vpop.f32.mrf.mxu0
        %v732 = vadd.f32 0.0, %v731
        %733 = vmatmul.f32.gmra.mxu0 %v628
        %v734 = vpop.f32.mrf.mxu0
        %v735 = vadd.f32 0.0, %v734
        %736 = vmatmul.f32.gmra.mxu0 %v631
        %v737 = vpop.f32.mrf.mxu0
        %v738 = vadd.f32 0.0, %v737
        %739 = vmatmul.f32.gmra.mxu0 %v634
        %v740 = vpop.f32.mrf.mxu0
        %v741 = vadd.f32 0.0, %v740
        %742 = vmatmul.f32.gmra.mxu0 %v637
        %v743 = vpop.f32.mrf.mxu0
        %v744 = vadd.f32 0.0, %v743
        %745 = vmatmul.f32.gmra.mxu0 %v640
        %v746 = vpop.f32.mrf.mxu0
        %v747 = vadd.f32 0.0, %v746
        %748 = vmatmul.f32.gmra.mxu0 %v643
        %v749 = vpop.f32.mrf.mxu0
        %v750 = vadd.f32 0.0, %v749
        %751 = vmatmul.f32.gmra.mxu0 %v646
        %v752 = vpop.f32.mrf.mxu0
        %v753 = vadd.f32 0.0, %v752
        %754 = vmatmul.f32.gmra.mxu0 %v649
        %v755 = vpop.f32.mrf.mxu0
        %v756 = vadd.f32 0.0, %v755
        %757 = vmatmul.f32.gmra.mxu0 %v652
        %v758 = vpop.f32.mrf.mxu0
        %v759 = vadd.f32 0.0, %v758
        %760 = vmatmul.f32.gmra.mxu0 %v655
        %v761 = vpop.f32.mrf.mxu0
        %v762 = vadd.f32 0.0, %v761
        %763 = vmatmul.f32.gmra.mxu0 %v658
        %v764 = vpop.f32.mrf.mxu0
        %v765 = vadd.f32 0.0, %v764
        %766 = vmatmul.f32.gmra.mxu0 %v661
        %v767 = vpop.f32.mrf.mxu0
        %v768 = vadd.f32 0.0, %v767
        %769 = vmatmul.f32.gmra.mxu0 %v664
        %v770 = vpop.f32.mrf.mxu0
        %v771 = vadd.f32 0.0, %v770
        %772 = vmatmul.f32.gmra.mxu0 %v667
        %v773 = vpop.f32.mrf.mxu0
        %v774 = vadd.f32 0.0, %v773
        %775 = vmatmul.f32.gmra.mxu0 %v670
        %v776 = vpop.f32.mrf.mxu0
        %v777 = vadd.f32 0.0, %v776
        %778 = vmatmul.f32.gmra.mxu0 %v673
        %v779 = vpop.f32.mrf.mxu0
        %v780 = vadd.f32 0.0, %v779
        %781 = vmatmul.f32.gmra.mxu0 %v676
        %v782 = vpop.f32.mrf.mxu0
        %v783 = vadd.f32 0.0, %v782
        %784 = vmatmul.f32.gmra.mxu0 %v679
        %v785 = vpop.f32.mrf.mxu0
        %v786 = vadd.f32 0.0, %v785
        %787 = vmatmul.f32.gmra.mxu0 %v682
        %v788 = vpop.f32.mrf.mxu0
        %v789 = vadd.f32 0.0, %v788
        %790 = vmatmul.f32.gmra.mxu0 %v685
        %v791 = vpop.f32.mrf.mxu0
        %v792 = vadd.f32 0.0, %v791
        %793 = vmatmul.f32.gmra.mxu0 %v688
        %v794 = vpop.f32.mrf.mxu0
        %v795 = vadd.f32 0.0, %v794
        %796 = vmatmul.f32.gmra.mxu0 %v691
        %v797 = vpop.f32.mrf.mxu0
        %v798 = vadd.f32 0.0, %v797
        %799 = vmatmul.f32.gmra.mxu0 %v694
        %v800 = vpop.f32.mrf.mxu0
        %v801 = vadd.f32 0.0, %v800
        %802 = vdwg.mxu0
        %803 = vmatpush.msra.mxu0 0.0
        %804 = vmatpush.msra.mxu0 0.0
        %805 = vmatpush.msra.mxu0 0.0
        %806 = vmatpush.msra.mxu0 0.0
        %807 = vmatpush.msra.mxu0 0.0
        %808 = vmatpush.msra.mxu0 0.0
        %809 = vmatpush.msra.mxu0 0.0
        %810 = vmatpush.msra.mxu0 0.0
        %811 = vmatpush.msra.mxu0 0.0
        %812 = vmatpush.msra.mxu0 0.0
        %813 = vmatpush.msra.mxu0 0.0
        %814 = vmatpush.msra.mxu0 0.0
        %815 = vmatpush.msra.mxu0 0.0
        %816 = vmatpush.msra.mxu0 %v700
        %817 = vmatpush.msra.mxu0 %v611
        %818 = vmatpush.msra.mxu0 %v607
        %819 = vmatmul.f32.gmra.mxu0 %v619
        %v820 = vpop.f32.mrf.mxu0
        %v821 = vadd.f32 0.0, %v820
        %822 = vmatmul.f32.gmra.mxu0 %v622
        %v823 = vpop.f32.mrf.mxu0
        %v824 = vadd.f32 0.0, %v823
        %825 = vmatmul.f32.gmra.mxu0 %v625
        %v826 = vpop.f32.mrf.mxu0
        %v827 = vadd.f32 0.0, %v826
        %828 = vmatmul.f32.gmra.mxu0 %v628
        %v829 = vpop.f32.mrf.mxu0
        %v830 = vadd.f32 0.0, %v829
        %831 = vmatmul.f32.gmra.mxu0 %v631
        %v832 = vpop.f32.mrf.mxu0
        %v833 = vadd.f32 0.0, %v832
        %834 = vmatmul.f32.gmra.mxu0 %v634
        %v835 = vpop.f32.mrf.mxu0
        %v836 = vadd.f32 0.0, %v835
        %837 = vmatmul.f32.gmra.mxu0 %v637
        %v838 = vpop.f32.mrf.mxu0
        %v839 = vadd.f32 0.0, %v838
        %840 = vmatmul.f32.gmra.mxu0 %v640
        %v841 = vpop.f32.mrf.mxu0
        %v842 = vadd.f32 0.0, %v841
        %843 = vmatmul.f32.gmra.mxu0 %v643
        %v844 = vpop.f32.mrf.mxu0
        %v845 = vadd.f32 0.0, %v844
        %846 = vmatmul.f32.gmra.mxu0 %v646
        %v847 = vpop.f32.mrf.mxu0
        %v848 = vadd.f32 0.0, %v847
        %849 = vmatmul.f32.gmra.mxu0 %v649
        %v850 = vpop.f32.mrf.mxu0
        %v851 = vadd.f32 0.0, %v850
        %852 = vmatmul.f32.gmra.mxu0 %v652
        %v853 = vpop.f32.mrf.mxu0
        %v854 = vadd.f32 0.0, %v853
        %855 = vmatmul.f32.gmra.mxu0 %v655
        %v856 = vpop.f32.mrf.mxu0
        %v857 = vadd.f32 0.0, %v856
        %858 = vmatmul.f32.gmra.mxu0 %v658
        %v859 = vpop.f32.mrf.mxu0
        %v860 = vadd.f32 0.0, %v859
        %861 = vmatmul.f32.gmra.mxu0 %v661
        %v862 = vpop.f32.mrf.mxu0
        %v863 = vadd.f32 0.0, %v862
        %864 = vmatmul.f32.gmra.mxu0 %v664
        %v865 = vpop.f32.mrf.mxu0
        %v866 = vadd.f32 0.0, %v865
        %867 = vmatmul.f32.gmra.mxu0 %v667
        %v868 = vpop.f32.mrf.mxu0
        %v869 = vadd.f32 0.0, %v868
        %870 = vmatmul.f32.gmra.mxu0 %v670
        %v871 = vpop.f32.mrf.mxu0
        %v872 = vadd.f32 0.0, %v871
        %873 = vmatmul.f32.gmra.mxu0 %v673
        %v874 = vpop.f32.mrf.mxu0
        %v875 = vadd.f32 0.0, %v874
        %876 = vmatmul.f32.gmra.mxu0 %v676
        %v877 = vpop.f32.mrf.mxu0
        %v878 = vadd.f32 0.0, %v877
        %879 = vmatmul.f32.gmra.mxu0 %v679
        %v880 = vpop.f32.mrf.mxu0
        %v881 = vadd.f32 0.0, %v880
        %882 = vmatmul.f32.gmra.mxu0 %v682
        %v883 = vpop.f32.mrf.mxu0
        %v884 = vadd.f32 0.0, %v883
        %885 = vmatmul.f32.gmra.mxu0 %v685
        %v886 = vpop.f32.mrf.mxu0
        %v887 = vadd.f32 0.0, %v886
        %888 = vmatmul.f32.gmra.mxu0 %v688
        %v889 = vpop.f32.mrf.mxu0
        %v890 = vadd.f32 0.0, %v889
        %891 = vmatmul.f32.gmra.mxu0 %v691
        %v892 = vpop.f32.mrf.mxu0
        %v893 = vadd.f32 0.0, %v892
        %894 = vmatmul.f32.gmra.mxu0 %v694
        %v895 = vpop.f32.mrf.mxu0
        %v896 = vadd.f32 0.0, %v895
        %897 = vdwg.mxu0
        %898 = vmatpush.msra.mxu0 0.0
        %899 = vmatpush.msra.mxu0 0.0
        %900 = vmatpush.msra.mxu0 0.0
        %901 = vmatpush.msra.mxu0 0.0
        %902 = vmatpush.msra.mxu0 0.0
        %903 = vmatpush.msra.mxu0 0.0
        %904 = vmatpush.msra.mxu0 0.0
        %905 = vmatpush.msra.mxu0 0.0
        %906 = vmatpush.msra.mxu0 0.0
        %907 = vmatpush.msra.mxu0 0.0
        %908 = vmatpush.msra.mxu0 0.0
        %909 = vmatpush.msra.mxu0 0.0
        %910 = vmatpush.msra.mxu0 0.0
        %911 = vmatpush.msra.mxu0 %v703
        %912 = vmatpush.msra.mxu0 %v612
        %913 = vmatpush.msra.mxu0 %v608
        %914 = vmatmul.f32.gmra.mxu0 %v619
        %v915 = vpop.f32.mrf.mxu0
        %v916 = vadd.f32 0.0, %v915
        %917 = vmatmul.f32.gmra.mxu0 %v622
        %v918 = vpop.f32.mrf.mxu0
        %v919 = vadd.f32 0.0, %v918
        %920 = vmatmul.f32.gmra.mxu0 %v625
        %v921 = vpop.f32.mrf.mxu0
        %v922 = vadd.f32 0.0, %v921
        %923 = vmatmul.f32.gmra.mxu0 %v628
        %v924 = vpop.f32.mrf.mxu0
        %v925 = vadd.f32 0.0, %v924
        %926 = vmatmul.f32.gmra.mxu0 %v631
        %v927 = vpop.f32.mrf.mxu0
        %v928 = vadd.f32 0.0, %v927
        %929 = vmatmul.f32.gmra.mxu0 %v634
        %v930 = vpop.f32.mrf.mxu0
        %v931 = vadd.f32 0.0, %v930
        %932 = vmatmul.f32.gmra.mxu0 %v637
        %v933 = vpop.f32.mrf.mxu0
        %v934 = vadd.f32 0.0, %v933
        %935 = vmatmul.f32.gmra.mxu0 %v640
        %v936 = vpop.f32.mrf.mxu0
        %v937 = vadd.f32 0.0, %v936
        %938 = vmatmul.f32.gmra.mxu0 %v643
        %v939 = vpop.f32.mrf.mxu0
        %v940 = vadd.f32 0.0, %v939
        %941 = vmatmul.f32.gmra.mxu0 %v646
        %v942 = vpop.f32.mrf.mxu0
        %v943 = vadd.f32 0.0, %v942
        %944 = vmatmul.f32.gmra.mxu0 %v649
        %v945 = vpop.f32.mrf.mxu0
        %v946 = vadd.f32 0.0, %v945
        %947 = vmatmul.f32.gmra.mxu0 %v652
        %v948 = vpop.f32.mrf.mxu0
        %v949 = vadd.f32 0.0, %v948
        %950 = vmatmul.f32.gmra.mxu0 %v655
        %v951 = vpop.f32.mrf.mxu0
        %v952 = vadd.f32 0.0, %v951
        %953 = vmatmul.f32.gmra.mxu0 %v658
        %v954 = vpop.f32.mrf.mxu0
        %v955 = vadd.f32 0.0, %v954
        %956 = vmatmul.f32.gmra.mxu0 %v661
        %v957 = vpop.f32.mrf.mxu0
        %v958 = vadd.f32 0.0, %v957
        %959 = vmatmul.f32.gmra.mxu0 %v664
        %v960 = vpop.f32.mrf.mxu0
        %v961 = vadd.f32 0.0, %v960
        %962 = vmatmul.f32.gmra.mxu0 %v667
        %v963 = vpop.f32.mrf.mxu0
        %v964 = vadd.f32 0.0, %v963
        %965 = vmatmul.f32.gmra.mxu0 %v670
        %v966 = vpop.f32.mrf.mxu0
        %v967 = vadd.f32 0.0, %v966
        %968 = vmatmul.f32.gmra.mxu0 %v673
        %v969 = vpop.f32.mrf.mxu0
        %v970 = vadd.f32 0.0, %v969
        %971 = vmatmul.f32.gmra.mxu0 %v676
        %v972 = vpop.f32.mrf.mxu0
        %v973 = vadd.f32 0.0, %v972
        %974 = vmatmul.f32.gmra.mxu0 %v679
        %v975 = vpop.f32.mrf.mxu0
        %v976 = vadd.f32 0.0, %v975
        %977 = vmatmul.f32.gmra.mxu0 %v682
        %v978 = vpop.f32.mrf.mxu0
        %v979 = vadd.f32 0.0, %v978
        %980 = vmatmul.f32.gmra.mxu0 %v685
        %v981 = vpop.f32.mrf.mxu0
        %v982 = vadd.f32 0.0, %v981
        %983 = vmatmul.f32.gmra.mxu0 %v688
        %v984 = vpop.f32.mrf.mxu0
        %v985 = vadd.f32 0.0, %v984
        %986 = vmatmul.f32.gmra.mxu0 %v691
        %v987 = vpop.f32.mrf.mxu0
        %v988 = vadd.f32 0.0, %v987
        %989 = vmatmul.f32.gmra.mxu0 %v694
        %v990 = vpop.f32.mrf.mxu0
        %v991 = vadd.f32 0.0, %v990
        %992 = vdwg.mxu0
        %993 = vmatpush.msra.mxu0 0.0
        %994 = vmatpush.msra.mxu0 0.0
        %995 = vmatpush.msra.mxu0 0.0
        %996 = vmatpush.msra.mxu0 0.0
        %997 = vmatpush.msra.mxu0 0.0
        %998 = vmatpush.msra.mxu0 0.0
        %999 = vmatpush.msra.mxu0 0.0
        %1000 = vmatpush.msra.mxu0 0.0
        %1001 = vmatpush.msra.mxu0 0.0
        %1002 = vmatpush.msra.mxu0 0.0
        %1003 = vmatpush.msra.mxu0 0.0
        %1004 = vmatpush.msra.mxu0 0.0
        %1005 = vmatpush.msra.mxu0 0.0
        %1006 = vmatpush.msra.mxu0 %v706
        %1007 = vmatpush.msra.mxu0 %v613
        %1008 = vmatpush.msra.mxu0 %v609
        %1009 = vmatmul.f32.gmra.mxu0 %v619
        %v1010 = vpop.f32.mrf.mxu0
        %v1011 = vadd.f32 0.0, %v1010
        %1012 = vmatmul.f32.gmra.mxu0 %v622
        %v1013 = vpop.f32.mrf.mxu0
        %v1014 = vadd.f32 0.0, %v1013
        %1015 = vmatmul.f32.gmra.mxu0 %v625
        %v1016 = vpop.f32.mrf.mxu0
        %v1017 = vadd.f32 0.0, %v1016
        %1018 = vmatmul.f32.gmra.mxu0 %v628
        %v1019 = vpop.f32.mrf.mxu0
        %v1020 = vadd.f32 0.0, %v1019
        %1021 = vmatmul.f32.gmra.mxu0 %v631
        %v1022 = vpop.f32.mrf.mxu0
        %v1023 = vadd.f32 0.0, %v1022
        %1024 = vmatmul.f32.gmra.mxu0 %v634
        %v1025 = vpop.f32.mrf.mxu0
        %v1026 = vadd.f32 0.0, %v1025
        %1027 = vmatmul.f32.gmra.mxu0 %v637
        %v1028 = vpop.f32.mrf.mxu0
        %v1029 = vadd.f32 0.0, %v1028
        %1030 = vmatmul.f32.gmra.mxu0 %v640
        %v1031 = vpop.f32.mrf.mxu0
        %v1032 = vadd.f32 0.0, %v1031
        %1033 = vmatmul.f32.gmra.mxu0 %v643
        %v1034 = vpop.f32.mrf.mxu0
        %v1035 = vadd.f32 0.0, %v1034
        %1036 = vmatmul.f32.gmra.mxu0 %v646
        %v1037 = vpop.f32.mrf.mxu0
        %v1038 = vadd.f32 0.0, %v1037
        %1039 = vmatmul.f32.gmra.mxu0 %v649
        %v1040 = vpop.f32.mrf.mxu0
        %v1041 = vadd.f32 0.0, %v1040
        %1042 = vmatmul.f32.gmra.mxu0 %v652
        %v1043 = vpop.f32.mrf.mxu0
        %v1044 = vadd.f32 0.0, %v1043
        %1045 = vmatmul.f32.gmra.mxu0 %v655
        %v1046 = vpop.f32.mrf.mxu0
        %v1047 = vadd.f32 0.0, %v1046
        %1048 = vmatmul.f32.gmra.mxu0 %v658
        %v1049 = vpop.f32.mrf.mxu0
        %v1050 = vadd.f32 0.0, %v1049
        %1051 = vmatmul.f32.gmra.mxu0 %v661
        %v1052 = vpop.f32.mrf.mxu0
        %v1053 = vadd.f32 0.0, %v1052
        %1054 = vmatmul.f32.gmra.mxu0 %v664
        %v1055 = vpop.f32.mrf.mxu0
        %v1056 = vadd.f32 0.0, %v1055
        %1057 = vmatmul.f32.gmra.mxu0 %v667
        %v1058 = vpop.f32.mrf.mxu0
        %v1059 = vadd.f32 0.0, %v1058
        %1060 = vmatmul.f32.gmra.mxu0 %v670
        %v1061 = vpop.f32.mrf.mxu0
        %v1062 = vadd.f32 0.0, %v1061
        %1063 = vmatmul.f32.gmra.mxu0 %v673
        %v1064 = vpop.f32.mrf.mxu0
        %v1065 = vadd.f32 0.0, %v1064
        %1066 = vmatmul.f32.gmra.mxu0 %v676
        %v1067 = vpop.f32.mrf.mxu0
        %v1068 = vadd.f32 0.0, %v1067
        %1069 = vmatmul.f32.gmra.mxu0 %v679
        %v1070 = vpop.f32.mrf.mxu0
        %v1071 = vadd.f32 0.0, %v1070
        %1072 = vmatmul.f32.gmra.mxu0 %v682
        %v1073 = vpop.f32.mrf.mxu0
        %v1074 = vadd.f32 0.0, %v1073
        %1075 = vmatmul.f32.gmra.mxu0 %v685
        %v1076 = vpop.f32.mrf.mxu0
        %v1077 = vadd.f32 0.0, %v1076
        %1078 = vmatmul.f32.gmra.mxu0 %v688
        %v1079 = vpop.f32.mrf.mxu0
        %v1080 = vadd.f32 0.0, %v1079
        %1081 = vmatmul.f32.gmra.mxu0 %v691
        %v1082 = vpop.f32.mrf.mxu0
        %v1083 = vadd.f32 0.0, %v1082
        %1084 = vmatmul.f32.gmra.mxu0 %v694
        %v1085 = vpop.f32.mrf.mxu0
        %v1086 = vadd.f32 0.0, %v1085
        %1087 = vdwg.mxu0
        %v1088 = vadd.f32 %v732, %v756
        %v1089 = vadd.f32 %v827, %v851
        %v1090 = vadd.f32 %v922, %v946
        %v1091 = vadd.f32 %v1017, %v1041
        %v1092 = vadd.f32 %v735, %v759
        %v1093 = vadd.f32 %v830, %v854
        %v1094 = vadd.f32 %v925, %v949
        %v1095 = vadd.f32 %v1020, %v1044
        %v1096 = vadd.f32 %v738, %v762
        %v1097 = vadd.f32 %v833, %v857
        %v1098 = vadd.f32 %v928, %v952
        %v1099 = vadd.f32 %v1023, %v1047
        %v1100 = vadd.f32 %v741, %v765
        %v1101 = vadd.f32 %v836, %v860
        %v1102 = vadd.f32 %v931, %v955
        %v1103 = vadd.f32 %v1026, %v1050
        %v1104 = vadd.f32 %v744, %v768
        %v1105 = vadd.f32 %v839, %v863
        %v1106 = vadd.f32 %v934, %v958
        %v1107 = vadd.f32 %v1029, %v1053
        %v1108 = vadd.f32 %v747, %v771
        %v1109 = vadd.f32 %v842, %v866
        %v1110 = vadd.f32 %v937, %v961
        %v1111 = vadd.f32 %v1032, %v1056
        %v1112 = vadd.f32 %v750, %v774
        %v1113 = vadd.f32 %v845, %v869
        %v1114 = vadd.f32 %v940, %v964
        %v1115 = vadd.f32 %v1035, %v1059
        %v1116 = vadd.f32 %v753, %v777
        %v1117 = vadd.f32 %v848, %v872
        %v1118 = vadd.f32 %v943, %v967
        %v1119 = vadd.f32 %v1038, %v1062
        %vm1120 = vcmp.ge.f32.partialorder %v1088, 0.0
        %vm1121 = vcmp.ge.f32.partialorder %v1089, 0.0
        %vm1122 = vcmp.ge.f32.partialorder %v1090, 0.0
        %vm1123 = vcmp.ge.f32.partialorder %v1091, 0.0
        %vm1124 = vcmp.ge.f32.partialorder %v1092, 0.0
        %vm1125 = vcmp.ge.f32.partialorder %v1093, 0.0
        %vm1126 = vcmp.ge.f32.partialorder %v1094, 0.0
        %vm1127 = vcmp.ge.f32.partialorder %v1095, 0.0
        %vm1128 = vcmp.ge.f32.partialorder %v1096, 0.0
        %vm1129 = vcmp.ge.f32.partialorder %v1097, 0.0
        %vm1130 = vcmp.ge.f32.partialorder %v1098, 0.0
        %vm1131 = vcmp.ge.f32.partialorder %v1099, 0.0
        %vm1132 = vcmp.ge.f32.partialorder %v1100, 0.0
        %vm1133 = vcmp.ge.f32.partialorder %v1101, 0.0
        %vm1134 = vcmp.ge.f32.partialorder %v1102, 0.0
        %vm1135 = vcmp.ge.f32.partialorder %v1103, 0.0
        %vm1136 = vcmp.ge.f32.partialorder %v1104, 0.0
        %vm1137 = vcmp.ge.f32.partialorder %v1105, 0.0
        %vm1138 = vcmp.ge.f32.partialorder %v1106, 0.0
        %vm1139 = vcmp.ge.f32.partialorder %v1107, 0.0
        %vm1140 = vcmp.ge.f32.partialorder %v1108, 0.0
        %vm1141 = vcmp.ge.f32.partialorder %v1109, 0.0
        %vm1142 = vcmp.ge.f32.partialorder %v1110, 0.0
        %vm1143 = vcmp.ge.f32.partialorder %v1111, 0.0
        %vm1144 = vcmp.ge.f32.partialorder %v1112, 0.0
        %vm1145 = vcmp.ge.f32.partialorder %v1113, 0.0
        %vm1146 = vcmp.ge.f32.partialorder %v1114, 0.0
        %vm1147 = vcmp.ge.f32.partialorder %v1115, 0.0
        %vm1148 = vcmp.ge.f32.partialorder %v1116, 0.0
        %vm1149 = vcmp.ge.f32.partialorder %v1117, 0.0
        %vm1150 = vcmp.ge.f32.partialorder %v1118, 0.0
        %vm1151 = vcmp.ge.f32.partialorder %v1119, 0.0
        %v1152 = vmul.f32 %v1088, 0.2
        %v1153 = vmul.f32 %v1089, 0.2
        %v1154 = vmul.f32 %v1090, 0.2
        %v1155 = vmul.f32 %v1091, 0.2
        %v1156 = vmul.f32 %v1092, 0.2
        %v1157 = vmul.f32 %v1093, 0.2
        %v1158 = vmul.f32 %v1094, 0.2
        %v1159 = vmul.f32 %v1095, 0.2
        %v1160 = vmul.f32 %v1096, 0.2
        %v1161 = vmul.f32 %v1097, 0.2
        %v1162 = vmul.f32 %v1098, 0.2
        %v1163 = vmul.f32 %v1099, 0.2
        %v1164 = vmul.f32 %v1100, 0.2
        %v1165 = vmul.f32 %v1101, 0.2
        %v1166 = vmul.f32 %v1102, 0.2
        %v1167 = vmul.f32 %v1103, 0.2
        %v1168 = vmul.f32 %v1104, 0.2
        %v1169 = vmul.f32 %v1105, 0.2
        %v1170 = vmul.f32 %v1106, 0.2
        %v1171 = vmul.f32 %v1107, 0.2
        %v1172 = vmul.f32 %v1108, 0.2
        %v1173 = vmul.f32 %v1109, 0.2
        %v1174 = vmul.f32 %v1110, 0.2
        %v1175 = vmul.f32 %v1111, 0.2
        %v1176 = vmul.f32 %v1112, 0.2
        %v1177 = vmul.f32 %v1113, 0.2
        %v1178 = vmul.f32 %v1114, 0.2
        %v1179 = vmul.f32 %v1115, 0.2
        %v1180 = vmul.f32 %v1116, 0.2
        %v1181 = vmul.f32 %v1117, 0.2
        %v1182 = vmul.f32 %v1118, 0.2
        %v1183 = vmul.f32 %v1119, 0.2
        %v1184 = vsel %vm1120, %v1088, %v1152
        %v1185 = vsel %vm1121, %v1089, %v1153
        %v1186 = vsel %vm1122, %v1090, %v1154
        %v1187 = vsel %vm1123, %v1091, %v1155
        %v1188 = vsel %vm1124, %v1092, %v1156
        %v1189 = vsel %vm1125, %v1093, %v1157
        %v1190 = vsel %vm1126, %v1094, %v1158
        %v1191 = vsel %vm1127, %v1095, %v1159
        %v1192 = vsel %vm1128, %v1096, %v1160
        %v1193 = vsel %vm1129, %v1097, %v1161
        %v1194 = vsel %vm1130, %v1098, %v1162
        %v1195 = vsel %vm1131, %v1099, %v1163
        %v1196 = vsel %vm1132, %v1100, %v1164
        %v1197 = vsel %vm1133, %v1101, %v1165
        %v1198 = vsel %vm1134, %v1102, %v1166
        %v1199 = vsel %vm1135, %v1103, %v1167
        %v1200 = vsel %vm1136, %v1104, %v1168
        %v1201 = vsel %vm1137, %v1105, %v1169
        %v1202 = vsel %vm1138, %v1106, %v1170
        %v1203 = vsel %vm1139, %v1107, %v1171
        %v1204 = vsel %vm1140, %v1108, %v1172
        %v1205 = vsel %vm1141, %v1109, %v1173
        %v1206 = vsel %vm1142, %v1110, %v1174
        %v1207 = vsel %vm1143, %v1111, %v1175
        %v1208 = vsel %vm1144, %v1112, %v1176
        %v1209 = vsel %vm1145, %v1113, %v1177
        %v1210 = vsel %vm1146, %v1114, %v1178
        %v1211 = vsel %vm1147, %v1115, %v1179
        %v1212 = vsel %vm1148, %v1116, %v1180
        %v1213 = vsel %vm1149, %v1117, %v1181
        %v1214 = vsel %vm1150, %v1118, %v1182
        %v1215 = vsel %vm1151, %v1119, %v1183
        %1216 = vset.pattern.permute.xlu0 1
        %1217 = vperm.xlu0 %1216, %v281
        %v1218 = vpop.permute.xlu0 %1217
        %1220 = vset.pattern.permute.xlu0 1
        %1221 = vperm.xlu0 %1220, %v282
        %v1222 = vpop.permute.xlu0 %1221
        %v1224 = vmul.f32 %v726, %v1218
        %v1225 = vmul.f32 %v821, %v1218
        %v1226 = vmul.f32 %v916, %v1218
        %v1227 = vmul.f32 %v1011, %v1218
        %v1228 = vmul.f32 %v729, %v1222
        %v1229 = vmul.f32 %v824, %v1222
        %v1230 = vmul.f32 %v919, %v1222
        %v1231 = vmul.f32 %v1014, %v1222
        %vm1232 = vcmp.ge.f32.partialorder %v1224, 0.0
        %vm1233 = vcmp.ge.f32.partialorder %v1225, 0.0
        %vm1234 = vcmp.ge.f32.partialorder %v1226, 0.0
        %vm1235 = vcmp.ge.f32.partialorder %v1227, 0.0
        %vm1236 = vcmp.ge.f32.partialorder %v1228, 0.0
        %vm1237 = vcmp.ge.f32.partialorder %v1229, 0.0
        %vm1238 = vcmp.ge.f32.partialorder %v1230, 0.0
        %vm1239 = vcmp.ge.f32.partialorder %v1231, 0.0
        %v1240 = vmul.f32 %v1224, 0.2
        %v1241 = vmul.f32 %v1225, 0.2
        %v1242 = vmul.f32 %v1226, 0.2
        %v1243 = vmul.f32 %v1227, 0.2
        %v1244 = vmul.f32 %v1228, 0.2
        %v1245 = vmul.f32 %v1229, 0.2
        %v1246 = vmul.f32 %v1230, 0.2
        %v1247 = vmul.f32 %v1231, 0.2
        %v1248 = vsel %vm1232, %v1224, %v1240
        %v1249 = vsel %vm1233, %v1225, %v1241
        %v1250 = vsel %vm1234, %v1226, %v1242
        %v1251 = vsel %vm1235, %v1227, %v1243
        %v1252 = vsel %vm1236, %v1228, %v1244
        %v1253 = vsel %vm1237, %v1229, %v1245
        %v1254 = vsel %vm1238, %v1230, %v1246
        %v1255 = vsel %vm1239, %v1231, %v1247
        %v1256 = vmax.f32 %v1184, %v1192
        %v1257 = vmax.f32 %v1185, %v1193
        %v1258 = vmax.f32 %v1186, %v1194
        %v1259 = vmax.f32 %v1187, %v1195
        %v1260 = vmax.f32 %v1188, %v1196
        %v1261 = vmax.f32 %v1189, %v1197
        %v1262 = vmax.f32 %v1190, %v1198
        %v1263 = vmax.f32 %v1191, %v1199
        %v1264 = vmax.f32 %v1200, %v1208
        %v1265 = vmax.f32 %v1201, %v1209
        %v1266 = vmax.f32 %v1202, %v1210
        %v1267 = vmax.f32 %v1203, %v1211
        %v1268 = vmax.f32 %v1204, %v1212
        %v1269 = vmax.f32 %v1205, %v1213
        %v1270 = vmax.f32 %v1206, %v1214
        %v1271 = vmax.f32 %v1207, %v1215
        %v1272 = vmax.f32 %v1256, %v1264
        %v1273 = vmax.f32 %v1257, %v1265
        %v1274 = vmax.f32 %v1258, %v1266
        %v1275 = vmax.f32 %v1259, %v1267
        %v1276 = vmax.f32 %v1260, %v1268
        %v1277 = vmax.f32 %v1261, %v1269
        %v1278 = vmax.f32 %v1262, %v1270
        %v1279 = vmax.f32 %v1263, %v1271
        %v1280 = vsub.f32 %v1184, %v1272
        %v1281 = vsub.f32 %v1185, %v1273
        %v1282 = vsub.f32 %v1186, %v1274
        %v1283 = vsub.f32 %v1187, %v1275
        %v1284 = vsub.f32 %v1188, %v1276
        %v1285 = vsub.f32 %v1189, %v1277
        %v1286 = vsub.f32 %v1190, %v1278
        %v1287 = vsub.f32 %v1191, %v1279
        %v1288 = vmul.f32 %v1280, 1.442695
        %v1289 = vpow.pop %v1288
        %v1290 = vmul.f32 %v1281, 1.442695
        %v1291 = vpow.pop %v1290
        %v1292 = vmul.f32 %v1282, 1.442695
        %v1293 = vpow.pop %v1292
        %v1294 = vmul.f32 %v1283, 1.442695
        %v1295 = vpow.pop %v1294
        %v1296 = vmul.f32 %v1284, 1.442695
        %v1297 = vpow.pop %v1296
        %v1298 = vmul.f32 %v1285, 1.442695
        %v1299 = vpow.pop %v1298
        %v1300 = vmul.f32 %v1286, 1.442695
        %v1301 = vpow.pop %v1300
        %v1302 = vmul.f32 %v1287, 1.442695
        %v1303 = vpow.pop %v1302
        %v1304 = vsub.f32 %v1192, %v1272
        %v1305 = vsub.f32 %v1193, %v1273
        %v1306 = vsub.f32 %v1194, %v1274
        %v1307 = vsub.f32 %v1195, %v1275
        %v1308 = vsub.f32 %v1196, %v1276
        %v1309 = vsub.f32 %v1197, %v1277
        %v1310 = vsub.f32 %v1198, %v1278
        %v1311 = vsub.f32 %v1199, %v1279
        %v1312 = vmul.f32 %v1304, 1.442695
        %v1313 = vpow.pop %v1312
        %v1314 = vmul.f32 %v1305, 1.442695
        %v1315 = vpow.pop %v1314
        %v1316 = vmul.f32 %v1306, 1.442695
        %v1317 = vpow.pop %v1316
        %v1318 = vmul.f32 %v1307, 1.442695
        %v1319 = vpow.pop %v1318
        %v1320 = vmul.f32 %v1308, 1.442695
        %v1321 = vpow.pop %v1320
        %v1322 = vmul.f32 %v1309, 1.442695
        %v1323 = vpow.pop %v1322
        %v1324 = vmul.f32 %v1310, 1.442695
        %v1325 = vpow.pop %v1324
        %v1326 = vmul.f32 %v1311, 1.442695
        %v1327 = vpow.pop %v1326
        %v1328 = vsub.f32 %v1200, %v1272
        %v1329 = vsub.f32 %v1201, %v1273
        %v1330 = vsub.f32 %v1202, %v1274
        %v1331 = vsub.f32 %v1203, %v1275
        %v1332 = vsub.f32 %v1204, %v1276
        %v1333 = vsub.f32 %v1205, %v1277
        %v1334 = vsub.f32 %v1206, %v1278
        %v1335 = vsub.f32 %v1207, %v1279
        %v1336 = vmul.f32 %v1328, 1.442695
        %v1337 = vpow.pop %v1336
        %v1338 = vmul.f32 %v1329, 1.442695
        %v1339 = vpow.pop %v1338
        %v1340 = vmul.f32 %v1330, 1.442695
        %v1341 = vpow.pop %v1340
        %v1342 = vmul.f32 %v1331, 1.442695
        %v1343 = vpow.pop %v1342
        %v1344 = vmul.f32 %v1332, 1.442695
        %v1345 = vpow.pop %v1344
        %v1346 = vmul.f32 %v1333, 1.442695
        %v1347 = vpow.pop %v1346
        %v1348 = vmul.f32 %v1334, 1.442695
        %v1349 = vpow.pop %v1348
        %v1350 = vmul.f32 %v1335, 1.442695
        %v1351 = vpow.pop %v1350
        %v1352 = vsub.f32 %v1208, %v1272
        %v1353 = vsub.f32 %v1209, %v1273
        %v1354 = vsub.f32 %v1210, %v1274
        %v1355 = vsub.f32 %v1211, %v1275
        %v1356 = vsub.f32 %v1212, %v1276
        %v1357 = vsub.f32 %v1213, %v1277
        %v1358 = vsub.f32 %v1214, %v1278
        %v1359 = vsub.f32 %v1215, %v1279
        %v1360 = vmul.f32 %v1352, 1.442695
        %v1361 = vpow.pop %v1360
        %v1362 = vmul.f32 %v1353, 1.442695
        %v1363 = vpow.pop %v1362
        %v1364 = vmul.f32 %v1354, 1.442695
        %v1365 = vpow.pop %v1364
        %v1366 = vmul.f32 %v1355, 1.442695
        %v1367 = vpow.pop %v1366
        %v1368 = vmul.f32 %v1356, 1.442695
        %v1369 = vpow.pop %v1368
        %v1370 = vmul.f32 %v1357, 1.442695
        %v1371 = vpow.pop %v1370
        %v1372 = vmul.f32 %v1358, 1.442695
        %v1373 = vpow.pop %v1372
        %v1374 = vmul.f32 %v1359, 1.442695
        %v1375 = vpow.pop %v1374
        %v1376 = vsub.f32 %v1248, %v1272
        %v1377 = vsub.f32 %v1249, %v1273
        %v1378 = vsub.f32 %v1250, %v1274
        %v1379 = vsub.f32 %v1251, %v1275
        %v1380 = vsub.f32 %v1252, %v1276
        %v1381 = vsub.f32 %v1253, %v1277
        %v1382 = vsub.f32 %v1254, %v1278
        %v1383 = vsub.f32 %v1255, %v1279
        %v1384 = vmul.f32 %v1376, 1.442695
        %v1385 = vpow.pop %v1384
        %v1386 = vmul.f32 %v1377, 1.442695
        %v1387 = vpow.pop %v1386
        %v1388 = vmul.f32 %v1378, 1.442695
        %v1389 = vpow.pop %v1388
        %v1390 = vmul.f32 %v1379, 1.442695
        %v1391 = vpow.pop %v1390
        %v1392 = vmul.f32 %v1380, 1.442695
        %v1393 = vpow.pop %v1392
        %v1394 = vmul.f32 %v1381, 1.442695
        %v1395 = vpow.pop %v1394
        %v1396 = vmul.f32 %v1382, 1.442695
        %v1397 = vpow.pop %v1396
        %v1398 = vmul.f32 %v1383, 1.442695
        %v1399 = vpow.pop %v1398
        %v1400 = vadd.f32 %v1289, %v1313
        %v1401 = vadd.f32 %v1291, %v1315
        %v1402 = vadd.f32 %v1293, %v1317
        %v1403 = vadd.f32 %v1295, %v1319
        %v1404 = vadd.f32 %v1297, %v1321
        %v1405 = vadd.f32 %v1299, %v1323
        %v1406 = vadd.f32 %v1301, %v1325
        %v1407 = vadd.f32 %v1303, %v1327
        %v1408 = vadd.f32 %v1400, %v1337
        %v1409 = vadd.f32 %v1401, %v1339
        %v1410 = vadd.f32 %v1402, %v1341
        %v1411 = vadd.f32 %v1403, %v1343
        %v1412 = vadd.f32 %v1404, %v1345
        %v1413 = vadd.f32 %v1405, %v1347
        %v1414 = vadd.f32 %v1406, %v1349
        %v1415 = vadd.f32 %v1407, %v1351
        %v1416 = vadd.f32 %v1408, %v1361
        %v1417 = vadd.f32 %v1409, %v1363
        %v1418 = vadd.f32 %v1410, %v1365
        %v1419 = vadd.f32 %v1411, %v1367
        %v1420 = vadd.f32 %v1412, %v1369
        %v1421 = vadd.f32 %v1413, %v1371
        %v1422 = vadd.f32 %v1414, %v1373
        %v1423 = vadd.f32 %v1415, %v1375
        %v1424 = vadd.f32 %v1416, %v1385
        %v1425 = vadd.f32 %v1417, %v1387
        %v1426 = vadd.f32 %v1418, %v1389
        %v1427 = vadd.f32 %v1419, %v1391
        %v1428 = vadd.f32 %v1420, %v1393
        %v1429 = vadd.f32 %v1421, %v1395
        %v1430 = vadd.f32 %v1422, %v1397
        %v1431 = vadd.f32 %v1423, %v1399
        %v1432 = vmul.f32 %v1289, %v780
        %v1433 = vmul.f32 %v1291, %v875
        %v1434 = vmul.f32 %v1293, %v970
        %v1435 = vmul.f32 %v1295, %v1065
        %v1436 = vmul.f32 %v1297, %v783
        %v1437 = vmul.f32 %v1299, %v878
        %v1438 = vmul.f32 %v1301, %v973
        %v1439 = vmul.f32 %v1303, %v1068
        %v1440 = vmul.f32 %v1313, %v786
        %v1441 = vmul.f32 %v1315, %v881
        %v1442 = vmul.f32 %v1317, %v976
        %v1443 = vmul.f32 %v1319, %v1071
        %v1444 = vmul.f32 %v1321, %v789
        %v1445 = vmul.f32 %v1323, %v884
        %v1446 = vmul.f32 %v1325, %v979
        %v1447 = vmul.f32 %v1327, %v1074
        %v1448 = vadd.f32 %v1432, %v1440
        %v1449 = vadd.f32 %v1433, %v1441
        %v1450 = vadd.f32 %v1434, %v1442
        %v1451 = vadd.f32 %v1435, %v1443
        %v1452 = vadd.f32 %v1436, %v1444
        %v1453 = vadd.f32 %v1437, %v1445
        %v1454 = vadd.f32 %v1438, %v1446
        %v1455 = vadd.f32 %v1439, %v1447
        %v1456 = vmul.f32 %v1337, %v792
        %v1457 = vmul.f32 %v1339, %v887
        %v1458 = vmul.f32 %v1341, %v982
        %v1459 = vmul.f32 %v1343, %v1077
        %v1460 = vmul.f32 %v1345, %v795
        %v1461 = vmul.f32 %v1347, %v890
        %v1462 = vmul.f32 %v1349, %v985
        %v1463 = vmul.f32 %v1351, %v1080
        %v1464 = vadd.f32 %v1448, %v1456
        %v1465 = vadd.f32 %v1449, %v1457
        %v1466 = vadd.f32 %v1450, %v1458
        %v1467 = vadd.f32 %v1451, %v1459
        %v1468 = vadd.f32 %v1452, %v1460
        %v1469 = vadd.f32 %v1453, %v1461
        %v1470 = vadd.f32 %v1454, %v1462
        %v1471 = vadd.f32 %v1455, %v1463
        %v1472 = vmul.f32 %v1361, %v798
        %v1473 = vmul.f32 %v1363, %v893
        %v1474 = vmul.f32 %v1365, %v988
        %v1475 = vmul.f32 %v1367, %v1083
        %v1476 = vmul.f32 %v1369, %v801
        %v1477 = vmul.f32 %v1371, %v896
        %v1478 = vmul.f32 %v1373, %v991
        %v1479 = vmul.f32 %v1375, %v1086
        %v1480 = vadd.f32 %v1464, %v1472
        %v1481 = vadd.f32 %v1465, %v1473
        %v1482 = vadd.f32 %v1466, %v1474
        %v1483 = vadd.f32 %v1467, %v1475
        %v1484 = vadd.f32 %v1468, %v1476
        %v1485 = vadd.f32 %v1469, %v1477
        %v1486 = vadd.f32 %v1470, %v1478
        %v1487 = vadd.f32 %v1471, %v1479
        %v1488 = vmul.f32 %v1385, %v726
        %v1489 = vmul.f32 %v1387, %v821
        %v1490 = vmul.f32 %v1389, %v916
        %v1491 = vmul.f32 %v1391, %v1011
        %v1492 = vmul.f32 %v1393, %v729
        %v1493 = vmul.f32 %v1395, %v824
        %v1494 = vmul.f32 %v1397, %v919
        %v1495 = vmul.f32 %v1399, %v1014
        %v1496 = vadd.f32 %v1480, %v1488
        %v1497 = vadd.f32 %v1481, %v1489
        %v1498 = vadd.f32 %v1482, %v1490
        %v1499 = vadd.f32 %v1483, %v1491
        %v1500 = vadd.f32 %v1484, %v1492
        %v1501 = vadd.f32 %v1485, %v1493
        %v1502 = vadd.f32 %v1486, %v1494
        %v1503 = vadd.f32 %v1487, %v1495
        %v1504 = vrcp.pop %v1424
        %v1505 = vmul.f32 %v1424, %v1504
        %v1506 = vsub.f32 1.0, %v1505
        %v1507 = vmul.f32 %v1504, %v1506
        %v1508 = vadd.f32 %v1504, %v1507
        %vm1509 = vweird.f32 %v1424
        %vm1510 = vweird.f32 %v1504
        %vm1511 = vmor %vm1509, %vm1510
        %v1512 = vsel %vm1511, %v1504, %v1508
        %v1513 = vand.u32 2147483647, %v1424
        %vm1514 = vcmp.eq.f32.partialorder %v1513, 8.507059e+37
        %v1515 = vand.u32 %v1424, 2147483648
        %v1516 = vor.u32 1.1754944e-38, %v1515
        %v1517 = vsel %vm1514, %v1516, %v1512
        %v1518 = vmul.f32 %v1496, %v1517
        %v1519 = vrcp.pop %v1425
        %v1520 = vmul.f32 %v1425, %v1519
        %v1521 = vsub.f32 1.0, %v1520
        %v1522 = vmul.f32 %v1519, %v1521
        %v1523 = vadd.f32 %v1519, %v1522
        %vm1524 = vweird.f32 %v1425
        %vm1525 = vweird.f32 %v1519
        %vm1526 = vmor %vm1524, %vm1525
        %v1527 = vsel %vm1526, %v1519, %v1523
        %v1528 = vand.u32 2147483647, %v1425
        %vm1529 = vcmp.eq.f32.partialorder %v1528, 8.507059e+37
        %v1530 = vand.u32 %v1425, 2147483648
        %v1531 = vor.u32 1.1754944e-38, %v1530
        %v1532 = vsel %vm1529, %v1531, %v1527
        %v1533 = vmul.f32 %v1497, %v1532
        %v1534 = vrcp.pop %v1426
        %v1535 = vmul.f32 %v1426, %v1534
        %v1536 = vsub.f32 1.0, %v1535
        %v1537 = vmul.f32 %v1534, %v1536
        %v1538 = vadd.f32 %v1534, %v1537
        %vm1539 = vweird.f32 %v1426
        %vm1540 = vweird.f32 %v1534
        %vm1541 = vmor %vm1539, %vm1540
        %v1542 = vsel %vm1541, %v1534, %v1538
        %v1543 = vand.u32 2147483647, %v1426
        %vm1544 = vcmp.eq.f32.partialorder %v1543, 8.507059e+37
        %v1545 = vand.u32 %v1426, 2147483648
        %v1546 = vor.u32 1.1754944e-38, %v1545
        %v1547 = vsel %vm1544, %v1546, %v1542
        %v1548 = vmul.f32 %v1498, %v1547
        %v1549 = vrcp.pop %v1427
        %v1550 = vmul.f32 %v1427, %v1549
        %v1551 = vsub.f32 1.0, %v1550
        %v1552 = vmul.f32 %v1549, %v1551
        %v1553 = vadd.f32 %v1549, %v1552
        %vm1554 = vweird.f32 %v1427
        %vm1555 = vweird.f32 %v1549
        %vm1556 = vmor %vm1554, %vm1555
        %v1557 = vsel %vm1556, %v1549, %v1553
        %v1558 = vand.u32 2147483647, %v1427
        %vm1559 = vcmp.eq.f32.partialorder %v1558, 8.507059e+37
        %v1560 = vand.u32 %v1427, 2147483648
        %v1561 = vor.u32 1.1754944e-38, %v1560
        %v1562 = vsel %vm1559, %v1561, %v1557
        %v1563 = vmul.f32 %v1499, %v1562
        %v1564 = vrcp.pop %v1428
        %v1565 = vmul.f32 %v1428, %v1564
        %v1566 = vsub.f32 1.0, %v1565
        %v1567 = vmul.f32 %v1564, %v1566
        %v1568 = vadd.f32 %v1564, %v1567
        %vm1569 = vweird.f32 %v1428
        %vm1570 = vweird.f32 %v1564
        %vm1571 = vmor %vm1569, %vm1570
        %v1572 = vsel %vm1571, %v1564, %v1568
        %v1573 = vand.u32 2147483647, %v1428
        %vm1574 = vcmp.eq.f32.partialorder %v1573, 8.507059e+37
        %v1575 = vand.u32 %v1428, 2147483648
        %v1576 = vor.u32 1.1754944e-38, %v1575
        %v1577 = vsel %vm1574, %v1576, %v1572
        %v1578 = vmul.f32 %v1500, %v1577
        %v1579 = vrcp.pop %v1429
        %v1580 = vmul.f32 %v1429, %v1579
        %v1581 = vsub.f32 1.0, %v1580
        %v1582 = vmul.f32 %v1579, %v1581
        %v1583 = vadd.f32 %v1579, %v1582
        %vm1584 = vweird.f32 %v1429
        %vm1585 = vweird.f32 %v1579
        %vm1586 = vmor %vm1584, %vm1585
        %v1587 = vsel %vm1586, %v1579, %v1583
        %v1588 = vand.u32 2147483647, %v1429
        %vm1589 = vcmp.eq.f32.partialorder %v1588, 8.507059e+37
        %v1590 = vand.u32 %v1429, 2147483648
        %v1591 = vor.u32 1.1754944e-38, %v1590
        %v1592 = vsel %vm1589, %v1591, %v1587
        %v1593 = vmul.f32 %v1501, %v1592
        %v1594 = vrcp.pop %v1430
        %v1595 = vmul.f32 %v1430, %v1594
        %v1596 = vsub.f32 1.0, %v1595
        %v1597 = vmul.f32 %v1594, %v1596
        %v1598 = vadd.f32 %v1594, %v1597
        %vm1599 = vweird.f32 %v1430
        %vm1600 = vweird.f32 %v1594
        %vm1601 = vmor %vm1599, %vm1600
        %v1602 = vsel %vm1601, %v1594, %v1598
        %v1603 = vand.u32 2147483647, %v1430
        %vm1604 = vcmp.eq.f32.partialorder %v1603, 8.507059e+37
        %v1605 = vand.u32 %v1430, 2147483648
        %v1606 = vor.u32 1.1754944e-38, %v1605
        %v1607 = vsel %vm1604, %v1606, %v1602
        %v1608 = vmul.f32 %v1502, %v1607
        %v1609 = vrcp.pop %v1431
        %v1610 = vmul.f32 %v1431, %v1609
        %v1611 = vsub.f32 1.0, %v1610
        %v1612 = vmul.f32 %v1609, %v1611
        %v1613 = vadd.f32 %v1609, %v1612
        %vm1614 = vweird.f32 %v1431
        %vm1615 = vweird.f32 %v1609
        %vm1616 = vmor %vm1614, %vm1615
        %v1617 = vsel %vm1616, %v1609, %v1613
        %v1618 = vand.u32 2147483647, %v1431
        %vm1619 = vcmp.eq.f32.partialorder %v1618, 8.507059e+37
        %v1620 = vand.u32 %v1431, 2147483648
        %v1621 = vor.u32 1.1754944e-38, %v1620
        %v1622 = vsel %vm1619, %v1621, %v1617
        %v1623 = vmul.f32 %v1503, %v1622
        %1624 = vset.pattern.permute.xlu0 2
        %1625 = vperm.xlu0 %1624, %v281
        %v1626 = vpop.permute.xlu0 %1625
        %1628 = vset.pattern.permute.xlu0 2
        %1629 = vperm.xlu0 %1628, %v282
        %v1630 = vpop.permute.xlu0 %1629
        %v1632 = vadd.f32 %v1518, %v1626
        %v1633 = vadd.f32 %v1533, %v1626
        %v1634 = vadd.f32 %v1548, %v1626
        %v1635 = vadd.f32 %v1563, %v1626
        %v1636 = vadd.f32 %v1578, %v1630
        %v1637 = vadd.f32 %v1593, %v1630
        %v1638 = vadd.f32 %v1608, %v1630
        %v1639 = vadd.f32 %v1623, %v1630
        %v1640 = vld [vmem:[%s3] sm:$0xff]
        %v1641 = vld [vmem:[%s3 + $0x8] sm:$0xff]
        %v1642 = vld [vmem:[%s3 + $0x10] sm:$0xf]
        %1643 = vset.pattern.permute.xlu0 3
        %1644 = vperm.xlu0 %1643, %v281
        %v1645 = vpop.permute.xlu0 %1644
        %1647 = vset.pattern.permute.xlu0 3
        %1648 = vperm.xlu0 %1647, %v282
        %v1649 = vpop.permute.xlu0 %1648
        %1651 = vset.pattern.permute.xlu0 3
        %1652 = vperm.xlu0 %1651, %v283
        %v1653 = vpop.permute.xlu0 %1652
        %vm1655 = vcmask 130048
        %v1657 = vsel %vm1655, %v1640, 0
        %v1660 = vsel %vm1655, %v1641, 0
        %v1663 = vsel %vm1655, %v1642, 0
        %1665 = vmatpush.msra.mxu0 0.0
        %1666 = vmatpush.msra.mxu0 0.0
        %1667 = vmatpush.msra.mxu0 0.0
        %1668 = vmatpush.msra.mxu0 0.0
        %1669 = vmatpush.msra.mxu0 0.0
        %1670 = vmatpush.msra.mxu0 0.0
        %1671 = vmatpush.msra.mxu0 0.0
        %1672 = vmatpush.msra.mxu0 0.0
        %1673 = vmatpush.msra.mxu0 0.0
        %1674 = vmatpush.msra.mxu0 0.0
        %1675 = vmatpush.msra.mxu0 0.0
        %1676 = vmatpush.msra.mxu0 0.0
        %1677 = vmatpush.msra.mxu0 0.0
        %1678 = vmatpush.msra.mxu0 0.0
        %1679 = vmatpush.msra.mxu0 %v1636
        %1680 = vmatpush.msra.mxu0 %v1632
        %1681 = vmatmul.f32.gmra.mxu0 %v1657
        %v1682 = vpop.f32.mrf.mxu0
        %v1683 = vadd.f32 %v1645, %v1682
        %1684 = vmatmul.f32.gmra.mxu0 %v1660
        %v1685 = vpop.f32.mrf.mxu0
        %v1686 = vadd.f32 %v1649, %v1685
        %1687 = vmatmul.f32.gmra.mxu0 %v1663
        %v1688 = vpop.f32.mrf.mxu0
        %v1689 = vadd.f32 %v1653, %v1688
        %1690 = vdwg.mxu0
        %1691 = vmatpush.msra.mxu0 0.0
        %1692 = vmatpush.msra.mxu0 0.0
        %1693 = vmatpush.msra.mxu0 0.0
        %1694 = vmatpush.msra.mxu0 0.0
        %1695 = vmatpush.msra.mxu0 0.0
        %1696 = vmatpush.msra.mxu0 0.0
        %1697 = vmatpush.msra.mxu0 0.0
        %1698 = vmatpush.msra.mxu0 0.0
        %1699 = vmatpush.msra.mxu0 0.0
        %1700 = vmatpush.msra.mxu0 0.0
        %1701 = vmatpush.msra.mxu0 0.0
        %1702 = vmatpush.msra.mxu0 0.0
        %1703 = vmatpush.msra.mxu0 0.0
        %1704 = vmatpush.msra.mxu0 0.0
        %1705 = vmatpush.msra.mxu0 %v1637
        %1706 = vmatpush.msra.mxu0 %v1633
        %1707 = vmatmul.f32.gmra.mxu0 %v1657
        %v1708 = vpop.f32.mrf.mxu0
        %v1709 = vadd.f32 %v1645, %v1708
        %1710 = vmatmul.f32.gmra.mxu0 %v1660
        %v1711 = vpop.f32.mrf.mxu0
        %v1712 = vadd.f32 %v1649, %v1711
        %1713 = vmatmul.f32.gmra.mxu0 %v1663
        %v1714 = vpop.f32.mrf.mxu0
        %v1715 = vadd.f32 %v1653, %v1714
        %1716 = vdwg.mxu0
        %1717 = vmatpush.msra.mxu0 0.0
        %1718 = vmatpush.msra.mxu0 0.0
        %1719 = vmatpush.msra.mxu0 0.0
        %1720 = vmatpush.msra.mxu0 0.0
        %1721 = vmatpush.msra.mxu0 0.0
        %1722 = vmatpush.msra.mxu0 0.0
        %1723 = vmatpush.msra.mxu0 0.0
        %1724 = vmatpush.msra.mxu0 0.0
        %1725 = vmatpush.msra.mxu0 0.0
        %1726 = vmatpush.msra.mxu0 0.0
        %1727 = vmatpush.msra.mxu0 0.0
        %1728 = vmatpush.msra.mxu0 0.0
        %1729 = vmatpush.msra.mxu0 0.0
        %1730 = vmatpush.msra.mxu0 0.0
        %1731 = vmatpush.msra.mxu0 %v1638
        %1732 = vmatpush.msra.mxu0 %v1634
        %1733 = vmatmul.f32.gmra.mxu0 %v1657
        %v1734 = vpop.f32.mrf.mxu0
        %v1735 = vadd.f32 %v1645, %v1734
        %1736 = vmatmul.f32.gmra.mxu0 %v1660
        %v1737 = vpop.f32.mrf.mxu0
        %v1738 = vadd.f32 %v1649, %v1737
        %1739 = vmatmul.f32.gmra.mxu0 %v1663
        %v1740 = vpop.f32.mrf.mxu0
        %v1741 = vadd.f32 %v1653, %v1740
        %1742 = vdwg.mxu0
        %1743 = vmatpush.msra.mxu0 0.0
        %1744 = vmatpush.msra.mxu0 0.0
        %1745 = vmatpush.msra.mxu0 0.0
        %1746 = vmatpush.msra.mxu0 0.0
        %1747 = vmatpush.msra.mxu0 0.0
        %1748 = vmatpush.msra.mxu0 0.0
        %1749 = vmatpush.msra.mxu0 0.0
        %1750 = vmatpush.msra.mxu0 0.0
        %1751 = vmatpush.msra.mxu0 0.0
        %1752 = vmatpush.msra.mxu0 0.0
        %1753 = vmatpush.msra.mxu0 0.0
        %1754 = vmatpush.msra.mxu0 0.0
        %1755 = vmatpush.msra.mxu0 0.0
        %1756 = vmatpush.msra.mxu0 0.0
        %1757 = vmatpush.msra.mxu0 %v1639
        %1758 = vmatpush.msra.mxu0 %v1635
        %1759 = vmatmul.f32.gmra.mxu0 %v1657
        %v1760 = vpop.f32.mrf.mxu0
        %v1761 = vadd.f32 %v1645, %v1760
        %1762 = vmatmul.f32.gmra.mxu0 %v1660
        %v1763 = vpop.f32.mrf.mxu0
        %v1764 = vadd.f32 %v1649, %v1763
        %1765 = vmatmul.f32.gmra.mxu0 %v1663
        %v1766 = vpop.f32.mrf.mxu0
        %v1767 = vadd.f32 %v1653, %v1766
        %1768 = vdwg.mxu0
        %v1769 = vsub.f32 0.0, %v1683
        %v1770 = vsub.f32 0.0, %v1709
        %v1771 = vsub.f32 0.0, %v1735
        %v1772 = vsub.f32 0.0, %v1761
        %v1773 = vsub.f32 0.0, %v1686
        %v1774 = vsub.f32 0.0, %v1712
        %v1775 = vsub.f32 0.0, %v1738
        %v1776 = vsub.f32 0.0, %v1764
        %v1777 = vsub.f32 0.0, %v1689
        %v1778 = vsub.f32 0.0, %v1715
        %v1779 = vsub.f32 0.0, %v1741
        %v1780 = vsub.f32 0.0, %v1767
        %v1781 = vmul.f32 %v1769, 1.442695
        %v1782 = vpow.pop %v1781
        %v1783 = vmul.f32 %v1770, 1.442695
        %v1784 = vpow.pop %v1783
        %v1785 = vmul.f32 %v1771, 1.442695
        %v1786 = vpow.pop %v1785
        %v1787 = vmul.f32 %v1772, 1.442695
        %v1788 = vpow.pop %v1787
        %v1789 = vmul.f32 %v1773, 1.442695
        %v1790 = vpow.pop %v1789
        %v1791 = vmul.f32 %v1774, 1.442695
        %v1792 = vpow.pop %v1791
        %v1793 = vmul.f32 %v1775, 1.442695
        %v1794 = vpow.pop %v1793
        %v1795 = vmul.f32 %v1776, 1.442695
        %v1796 = vpow.pop %v1795
        %v1797 = vmul.f32 %v1777, 1.442695
        %v1798 = vpow.pop %v1797
        %v1799 = vmul.f32 %v1778, 1.442695
        %v1800 = vpow.pop %v1799
        %v1801 = vmul.f32 %v1779, 1.442695
        %v1802 = vpow.pop %v1801
        %v1803 = vmul.f32 %v1780, 1.442695
        %v1804 = vpow.pop %v1803
        %v1805 = vadd.f32 %v1782, 1.0
        %v1806 = vadd.f32 %v1784, 1.0
        %v1807 = vadd.f32 %v1786, 1.0
        %v1808 = vadd.f32 %v1788, 1.0
        %v1809 = vadd.f32 %v1790, 1.0
        %v1810 = vadd.f32 %v1792, 1.0
        %v1811 = vadd.f32 %v1794, 1.0
        %v1812 = vadd.f32 %v1796, 1.0
        %v1813 = vadd.f32 %v1798, 1.0
        %v1814 = vadd.f32 %v1800, 1.0
        %v1815 = vadd.f32 %v1802, 1.0
        %v1816 = vadd.f32 %v1804, 1.0
        %v1817 = vrcp.pop %v1805
        %v1818 = vmul.f32 %v1805, %v1817
        %v1819 = vsub.f32 1.0, %v1818
        %v1820 = vmul.f32 %v1817, %v1819
        %v1821 = vadd.f32 %v1817, %v1820
        %vm1822 = vweird.f32 %v1805
        %vm1823 = vweird.f32 %v1817
        %vm1824 = vmor %vm1822, %vm1823
        %v1825 = vsel %vm1824, %v1817, %v1821
        %v1826 = vand.u32 2147483647, %v1805
        %vm1827 = vcmp.eq.f32.partialorder %v1826, 8.507059e+37
        %v1828 = vand.u32 %v1805, 2147483648
        %v1829 = vor.u32 1.1754944e-38, %v1828
        %v1830 = vsel %vm1827, %v1829, %v1825
        %v1831 = vmul.f32 1.0, %v1830
        %v1832 = vrcp.pop %v1806
        %v1833 = vmul.f32 %v1806, %v1832
        %v1834 = vsub.f32 1.0, %v1833
        %v1835 = vmul.f32 %v1832, %v1834
        %v1836 = vadd.f32 %v1832, %v1835
        %vm1837 = vweird.f32 %v1806
        %vm1838 = vweird.f32 %v1832
        %vm1839 = vmor %vm1837, %vm1838
        %v1840 = vsel %vm1839, %v1832, %v1836
        %v1841 = vand.u32 2147483647, %v1806
        %vm1842 = vcmp.eq.f32.partialorder %v1841, 8.507059e+37
        %v1843 = vand.u32 %v1806, 2147483648
        %v1844 = vor.u32 1.1754944e-38, %v1843
        %v1845 = vsel %vm1842, %v1844, %v1840
        %v1846 = vmul.f32 1.0, %v1845
        %v1847 = vrcp.pop %v1807
        %v1848 = vmul.f32 %v1807, %v1847
        %v1849 = vsub.f32 1.0, %v1848
        %v1850 = vmul.f32 %v1847, %v1849
        %v1851 = vadd.f32 %v1847, %v1850
        %vm1852 = vweird.f32 %v1807
        %vm1853 = vweird.f32 %v1847
        %vm1854 = vmor %vm1852, %vm1853
        %v1855 = vsel %vm1854, %v1847, %v1851
        %v1856 = vand.u32 2147483647, %v1807
        %vm1857 = vcmp.eq.f32.partialorder %v1856, 8.507059e+37
        %v1858 = vand.u32 %v1807, 2147483648
        %v1859 = vor.u32 1.1754944e-38, %v1858
        %v1860 = vsel %vm1857, %v1859, %v1855
        %v1861 = vmul.f32 1.0, %v1860
        %v1862 = vrcp.pop %v1808
        %v1863 = vmul.f32 %v1808, %v1862
        %v1864 = vsub.f32 1.0, %v1863
        %v1865 = vmul.f32 %v1862, %v1864
        %v1866 = vadd.f32 %v1862, %v1865
        %vm1867 = vweird.f32 %v1808
        %vm1868 = vweird.f32 %v1862
        %vm1869 = vmor %vm1867, %vm1868
        %v1870 = vsel %vm1869, %v1862, %v1866
        %v1871 = vand.u32 2147483647, %v1808
        %vm1872 = vcmp.eq.f32.partialorder %v1871, 8.507059e+37
        %v1873 = vand.u32 %v1808, 2147483648
        %v1874 = vor.u32 1.1754944e-38, %v1873
        %v1875 = vsel %vm1872, %v1874, %v1870
        %v1876 = vmul.f32 1.0, %v1875
        %v1877 = vrcp.pop %v1809
        %v1878 = vmul.f32 %v1809, %v1877
        %v1879 = vsub.f32 1.0, %v1878
        %v1880 = vmul.f32 %v1877, %v1879
        %v1881 = vadd.f32 %v1877, %v1880
        %vm1882 = vweird.f32 %v1809
        %vm1883 = vweird.f32 %v1877
        %vm1884 = vmor %vm1882, %vm1883
        %v1885 = vsel %vm1884, %v1877, %v1881
        %v1886 = vand.u32 2147483647, %v1809
        %vm1887 = vcmp.eq.f32.partialorder %v1886, 8.507059e+37
        %v1888 = vand.u32 %v1809, 2147483648
        %v1889 = vor.u32 1.1754944e-38, %v1888
        %v1890 = vsel %vm1887, %v1889, %v1885
        %v1891 = vmul.f32 1.0, %v1890
        %v1892 = vrcp.pop %v1810
        %v1893 = vmul.f32 %v1810, %v1892
        %v1894 = vsub.f32 1.0, %v1893
        %v1895 = vmul.f32 %v1892, %v1894
        %v1896 = vadd.f32 %v1892, %v1895
        %vm1897 = vweird.f32 %v1810
        %vm1898 = vweird.f32 %v1892
        %vm1899 = vmor %vm1897, %vm1898
        %v1900 = vsel %vm1899, %v1892, %v1896
        %v1901 = vand.u32 2147483647, %v1810
        %vm1902 = vcmp.eq.f32.partialorder %v1901, 8.507059e+37
        %v1903 = vand.u32 %v1810, 2147483648
        %v1904 = vor.u32 1.1754944e-38, %v1903
        %v1905 = vsel %vm1902, %v1904, %v1900
        %v1906 = vmul.f32 1.0, %v1905
        %v1907 = vrcp.pop %v1811
        %v1908 = vmul.f32 %v1811, %v1907
        %v1909 = vsub.f32 1.0, %v1908
        %v1910 = vmul.f32 %v1907, %v1909
        %v1911 = vadd.f32 %v1907, %v1910
        %vm1912 = vweird.f32 %v1811
        %vm1913 = vweird.f32 %v1907
        %vm1914 = vmor %vm1912, %vm1913
        %v1915 = vsel %vm1914, %v1907, %v1911
        %v1916 = vand.u32 2147483647, %v1811
        %vm1917 = vcmp.eq.f32.partialorder %v1916, 8.507059e+37
        %v1918 = vand.u32 %v1811, 2147483648
        %v1919 = vor.u32 1.1754944e-38, %v1918
        %v1920 = vsel %vm1917, %v1919, %v1915
        %v1921 = vmul.f32 1.0, %v1920
        %v1922 = vrcp.pop %v1812
        %v1923 = vmul.f32 %v1812, %v1922
        %v1924 = vsub.f32 1.0, %v1923
        %v1925 = vmul.f32 %v1922, %v1924
        %v1926 = vadd.f32 %v1922, %v1925
        %vm1927 = vweird.f32 %v1812
        %vm1928 = vweird.f32 %v1922
        %vm1929 = vmor %vm1927, %vm1928
        %v1930 = vsel %vm1929, %v1922, %v1926
        %v1931 = vand.u32 2147483647, %v1812
        %vm1932 = vcmp.eq.f32.partialorder %v1931, 8.507059e+37
        %v1933 = vand.u32 %v1812, 2147483648
        %v1934 = vor.u32 1.1754944e-38, %v1933
        %v1935 = vsel %vm1932, %v1934, %v1930
        %v1936 = vmul.f32 1.0, %v1935
        %v1937 = vrcp.pop %v1813
        %v1938 = vmul.f32 %v1813, %v1937
        %v1939 = vsub.f32 1.0, %v1938
        %v1940 = vmul.f32 %v1937, %v1939
        %v1941 = vadd.f32 %v1937, %v1940
        %vm1942 = vweird.f32 %v1813
        %vm1943 = vweird.f32 %v1937
        %vm1944 = vmor %vm1942, %vm1943
        %v1945 = vsel %vm1944, %v1937, %v1941
        %v1946 = vand.u32 2147483647, %v1813
        %vm1947 = vcmp.eq.f32.partialorder %v1946, 8.507059e+37
        %v1948 = vand.u32 %v1813, 2147483648
        %v1949 = vor.u32 1.1754944e-38, %v1948
        %v1950 = vsel %vm1947, %v1949, %v1945
        %v1951 = vmul.f32 1.0, %v1950
        %v1952 = vrcp.pop %v1814
        %v1953 = vmul.f32 %v1814, %v1952
        %v1954 = vsub.f32 1.0, %v1953
        %v1955 = vmul.f32 %v1952, %v1954
        %v1956 = vadd.f32 %v1952, %v1955
        %vm1957 = vweird.f32 %v1814
        %vm1958 = vweird.f32 %v1952
        %vm1959 = vmor %vm1957, %vm1958
        %v1960 = vsel %vm1959, %v1952, %v1956
        %v1961 = vand.u32 2147483647, %v1814
        %vm1962 = vcmp.eq.f32.partialorder %v1961, 8.507059e+37
        %v1963 = vand.u32 %v1814, 2147483648
        %v1964 = vor.u32 1.1754944e-38, %v1963
        %v1965 = vsel %vm1962, %v1964, %v1960
        %v1966 = vmul.f32 1.0, %v1965
        %v1967 = vrcp.pop %v1815
        %v1968 = vmul.f32 %v1815, %v1967
        %v1969 = vsub.f32 1.0, %v1968
        %v1970 = vmul.f32 %v1967, %v1969
        %v1971 = vadd.f32 %v1967, %v1970
        %vm1972 = vweird.f32 %v1815
        %vm1973 = vweird.f32 %v1967
        %vm1974 = vmor %vm1972, %vm1973
        %v1975 = vsel %vm1974, %v1967, %v1971
        %v1976 = vand.u32 2147483647, %v1815
        %vm1977 = vcmp.eq.f32.partialorder %v1976, 8.507059e+37
        %v1978 = vand.u32 %v1815, 2147483648
        %v1979 = vor.u32 1.1754944e-38, %v1978
        %v1980 = vsel %vm1977, %v1979, %v1975
        %v1981 = vmul.f32 1.0, %v1980
        %v1982 = vrcp.pop %v1816
        %v1983 = vmul.f32 %v1816, %v1982
        %v1984 = vsub.f32 1.0, %v1983
        %v1985 = vmul.f32 %v1982, %v1984
        %v1986 = vadd.f32 %v1982, %v1985
        %vm1987 = vweird.f32 %v1816
        %vm1988 = vweird.f32 %v1982
        %vm1989 = vmor %vm1987, %vm1988
        %v1990 = vsel %vm1989, %v1982, %v1986
        %v1991 = vand.u32 2147483647, %v1816
        %vm1992 = vcmp.eq.f32.partialorder %v1991, 8.507059e+37
        %v1993 = vand.u32 %v1816, 2147483648
        %v1994 = vor.u32 1.1754944e-38, %v1993
        %v1995 = vsel %vm1992, %v1994, %v1990
        %v1996 = vmul.f32 1.0, %v1995
        %1997 = vst [vmem:[%s237] sm:$0xff] %v1831
        %1998 = vst [vmem:[%s237 + $0x8] sm:$0xff] %v1846
        %1999 = vst [vmem:[%s237 + $0x10] sm:$0xff] %v1861
        %2000 = vst [vmem:[%s237 + $0x18] sm:$0xff] %v1876
        %2001 = vst [vmem:[%s237 + $0x20] sm:$0xff] %v1891
        %2002 = vst [vmem:[%s237 + $0x28] sm:$0xff] %v1906
        %2003 = vst [vmem:[%s237 + $0x30] sm:$0xff] %v1921
        %2004 = vst [vmem:[%s237 + $0x38] sm:$0xff] %v1936
        %2005 = vst [vmem:[%s237 + $0x40] sm:$0xf] %v1951
        %2006 = vst [vmem:[%s237 + $0x48] sm:$0xf] %v1966
        %2007 = vst [vmem:[%s237 + $0x50] sm:$0xf] %v1981
        %2008 = vst [vmem:[%s237 + $0x58] sm:$0xf] %v1996
        %s2009 = sand.u32 %s115, 1
        %s2010 = scalar_lea.sflag [#allocation4], %s2009
        %s2011 = sand.u32 %s115, 1
        %s2012 = smul.addr %s2011, 96
        %s2013 = scalar_lea.vmem [#allocation3], %s2012
        // Predicated region
        $region60: #{gdn_forward.1} parent=54 // pred_check
          %p2014 = pneg %p125
        $region61: #{gdn_forward.1} parent=54 // pred_check_branch
          %2016 = sbr.rel (%p2014) target = $region63
        $region62: #{gdn_forward.1} parent=54 // pred_region
          %s2017 = smul.u32 4, %s18
          %2019 = vsyncadd %s2010, 0
          %s2020 = smul.addr %s2017, 8
          %s2021 = scalar_lea.hbm %s4, %s2020
          %s2022 = sshll.u32 %s2013, 4
          %s2023 = int_to_ptr.vmem [resolvable:$true] %s2022
          %s2024 = sshll.u32 %s2021, 4
          %s2025 = int_to_ptr.hbm [resolvable:$true] %s2024
          %2030 = dma.vmem_to_hbm [thread:$0]  %s2023, 1536, %s2025, %s2010, 512, 2048, 32
        $region63: #{gdn_forward.1} parent=54 // pred_fallthru
          _
      $region55: #{gdn_forward.1} parent=5 // pred_fallthru
        _
      %p2031 = scmp.le.s32.totalorder 2, %s13
      // Predicated region
      $region64: #{gdn_forward.1} parent=5 // pred_check
        %p2032 = pneg %p2031
      $region65: #{gdn_forward.1} parent=5 // pred_check_branch
        %2034 = sbr.rel (%p2032) target = $region67
      $region66: #{gdn_forward.1} parent=5 // pred_region
        %s2035 = ssub.s32 %s13, 2
        // Predicated region
        $region68: #{gdn_forward.1} parent=66 // pred_check
          %p2036 = pneg %p131
        $region69: #{gdn_forward.1} parent=66 // pred_check_branch
          %2038 = sbr.rel (%p2036) target = $region71
        $region70: #{gdn_forward.1} parent=66 // pred_region
          %s2039 = sand.u32 %s116, 1
          %s2040 = scalar_lea.sflag [#allocation4], %s2039
          %s2041 = sand.u32 %s116, 1
          %s2042 = smul.addr %s2041, 96
          %s2043 = scalar_lea.vmem [#allocation3], %s2042
          %2045 = dma.done %s2040, 1536
        $region71: #{gdn_forward.1} parent=66 // pred_fallthru
          _
      $region67: #{gdn_forward.1} parent=5 // pred_fallthru
        _
    $region6: #{gdn_forward.1} parent=1 // loop_footer
      %s17 = sadd.s32 1, %s13
    $region7: #{gdn_forward.1} parent=1 // loop_footer_branch
      %12 = sbr.rel target = $region3
    $region8: #{gdn_forward.1} parent=1 // loop_exit
      _
    %2046 = vsyncpa [#allocation4], 1
    %s2047 = scalar_lea.sflag [#allocation4], 1
    %2048 = vsyncpa %s2047, 1

</llo_original>
